<compile_context>
chip_gen: v7x
topology: tpu7x:2x2x1
jax: 0.10.0
libtpu: 0.0.40
codegen_flags: <defaults>
</compile_context>

<pallas_src>
import math
import numpy as np
import jax
import jax.numpy as jnp
from jax import lax
from jax.experimental import pallas as pl
from jax.experimental.pallas import tpu as pltpu

INV_SQRT2 = 1.0 / math.sqrt(2.0)
BN_EPS = 1e-5

# Matmul-input dtype.  Set to jnp.bfloat16 on v6e/v7x to halve x/W DMA bytes and use the
# bf16-native MXU (stats / BN / GELU stay in f32).  Kept f32 by default for exact numerical
# parity with the f32 PyTorch reference; on v5e f32 is the right choice anyway (no bf16 VPU/EUP).
MATMUL_INPUT_DTYPE = jnp.float32


# ---------------- Pallas kernels ----------------

def _stats_kernel(x_ref, w_ref, stat_ref):
    """Recompute y = x @ W2 for this row tile and emit per-tile column sum / sum-of-squares
    (train-mode BatchNorm statistics).  y itself is never written back to HBM."""
    y = jnp.dot(x_ref[...], w_ref[...], preferred_element_type=jnp.float32)
    # Two sliced stores (no concatenate / cross-sublane shuffle).
    stat_ref[0, 0:1, :] = jnp.sum(y, axis=0, keepdims=True)
    stat_ref[0, 1:2, :] = jnp.sum(y * y, axis=0, keepdims=True)


def _fused_deconv_bn_gelu_kernel(x_ref, w_ref, scale_ref, shift_ref, o_ref):
    """Recompute y = x @ W2, apply precomputed per-column BN affine, exact (erf) GELU."""
    y = jnp.dot(x_ref[...], w_ref[...], preferred_element_type=jnp.float32)
    z = y * scale_ref[...] + shift_ref[...]
    o_ref[...] = 0.5 * z * (1.0 + lax.erf(z * INV_SQRT2))


# ---------------- tiling helper ----------------

def _choose_tiling(M, cap=1024):
    """Return (tile_rows, padded_rows).  Prefer a divisor of M (no padding); otherwise pad.
    Padded rows are zeros and contribute 0 to the BN sums (there is no bias)."""
    if M <= cap:
        return M, M                      # single full block (allowed: equals full dim)
    best = 0
    for t in range(8, cap + 1, 8):
        if M % t == 0:
            best = t
    if best >= 256:
        return best, M
    return cap, ((M + cap - 1) // cap) * cap


# ---------------- per-layer wrapper ----------------

def _upsample_layer_flat(x_flat, W, gamma, beta):
    """x_flat: (M, Cin) f32, rows = pixels (any order).  Returns (M, 4*Cout) f32 where the
    lane packing is (kh, kw, cout); no bias (it cancels under train-mode BatchNorm)."""
    M, Cin = x_flat.shape
    Cout = W.shape[1]
    K = 4 * Cout     # NOTE: lane width K should be a multiple of 128 (Cout >= 32) for
                     # unmasked stores; true for the configs used here.

    # PyTorch ConvTranspose2d weight: (Cin, Cout, kH, kW) -> (Cin, kH, kW, Cout) -> (Cin, 4*Cout)
    W2 = jnp.transpose(W, (0, 2, 3, 1)).reshape(Cin, K).astype(MATMUL_INPUT_DTYPE)

    tm, Mp = _choose_tiling(M)
    if Mp != M:
        x_flat = jnp.pad(x_flat, ((0, Mp - M), (0, 0)))
    x_p = x_flat.astype(MATMUL_INPUT_DTYPE)
    nt = Mp // tm

    # ---- pass 1: per-tile partial BatchNorm statistics (parallel grid, no y writeback) ----
    stats = pl.pallas_call(
        _stats_kernel,
        grid=(nt,),
        in_specs=[
            pl.BlockSpec((tm, Cin), lambda i: (i, 0)),
            pl.BlockSpec((Cin, K), lambda i: (0, 0)),
        ],
        out_specs=pl.BlockSpec((1, 2, K), lambda i: (i, 0, 0)),
        out_shape=jax.ShapeDtypeStruct((nt, 2, K), jnp.float32),
        compiler_params=pltpu.CompilerParams(dimension_semantics=("parallel",)),
    )(x_p, W2)

    # BatchNorm2d (training mode): batch stats over (N, 2H, 2W) per output channel,
    # biased variance for normalization (matches PyTorch train-mode forward).
    count = jnp.float32(M * 4)                       # true (unpadded) pixel count * 4 positions
    s = stats[:, 0, :].sum(axis=0).reshape(4, Cout).sum(axis=0)
    ssq = stats[:, 1, :].sum(axis=0).reshape(4, Cout).sum(axis=0)
    mean = s / count
    var = jnp.maximum(ssq / count - mean * mean, 0.0)   # guard f32 cancellation (bias removed
                                                        # from y already reduces the mean term)
    scale = gamma * lax.rsqrt(var + BN_EPS)
    shift = beta - mean * scale
    scale_col = jnp.tile(scale, 4).reshape(1, K)
    shift_col = jnp.tile(shift, 4).reshape(1, K)
    # TODO(synk): PyTorch train-mode BN also updates running_mean/running_var (a stateful side
    # effect); not materialized here (forward output does not depend on it).

    # ---- pass 2: fused deconv-matmul + BN affine + GELU, writing the final activation ----
    out_p = pl.pallas_call(
        _fused_deconv_bn_gelu_kernel,
        grid=(nt,),
        in_specs=[
            pl.BlockSpec((tm, Cin), lambda i: (i, 0)),
            pl.BlockSpec((Cin, K), lambda i: (0, 0)),
            pl.BlockSpec((1, K), lambda i: (0, 0)),
            pl.BlockSpec((1, K), lambda i: (0, 0)),
        ],
        out_specs=pl.BlockSpec((tm, K), lambda i: (i, 0)),
        out_shape=jax.ShapeDtypeStruct((Mp, K), jnp.float32),
        compiler_params=pltpu.CompilerParams(dimension_semantics=("parallel",)),
    )(x_p, W2, scale_col, shift_col)

    if Mp != M:
        out_p = out_p[:M]
    return out_p    # (M, 4*Cout), lanes packed (kh, kw, cout)


# ---------------- full stack forward ----------------

def upsample_stack_forward(x_nchw, params):
    if not params:
        return x_nchw
    N, C0, H0, W0 = x_nchw.shape
    L = len(params)

    # NCHW -> flat (N*H0*W0, C0) rows in (n, h0, w0) order.
    x = jnp.transpose(x_nchw, (0, 2, 3, 1)).reshape(N * H0 * W0, C0)

    for (W, b, gamma, beta) in params:            # b intentionally unused (cancels under BN)
        Cout = W.shape[1]
        x = _upsample_layer_flat(x, W, gamma, beta)   # (P, 4*Cout)
        x = x.reshape(-1, Cout)                        # free reshape: (4P, Cout), nested row order

    # Rows are now ordered (n, h0, w0, kh1, kw1, ..., khL, kwL) with channels in lanes.
    # The entire pixel shuffle of all layers + NHWC->NCHW collapses into this one transpose.
    Cout = params[-1][0].shape[1]
    x = x.reshape((N, H0, W0) + (2, 2) * L + (Cout,))
    perm = (0, 3 + 2 * L, 1) + tuple(1 + 2 * i for i in range(1, L + 1)) \
           + (2,) + tuple(2 + 2 * i for i in range(1, L + 1))
    x = jnp.transpose(x, perm)
    return x.reshape(N, Cout, H0 * (2 ** L), W0 * (2 ** L))


# ---------------- deterministic parameter init ----------------

def init_params(in_channels, out_channels, factor, key):
    params = []
    current_ch = in_channels
    f = factor
    while f > 1:
        key, k1, k2, k3, k4 = jax.random.split(key, 5)
        W = 0.1 * jax.random.normal(k1, (current_ch, out_channels, 2, 2), jnp.float32)
        b = 0.1 * jax.random.normal(k2, (out_channels,), jnp.float32)
        gamma = 1.0 + 0.1 * jax.random.normal(k3, (out_channels,), jnp.float32)
        beta = 0.1 * jax.random.normal(k4, (out_channels,), jnp.float32)
        params.append((W, b, gamma, beta))
        current_ch = out_channels
        f //= 2
    return params


# ---------------- pure-JAX reference (PyTorch semantics, with bias) ----------------

def ref_forward(x_nchw, params):
    x = x_nchw
    for (W, b, gamma, beta) in params:
        N, Cin, H, Wd = x.shape
        Cout = W.shape[1]
        y = jnp.einsum('nihw,iokl->nohkwl', x, W).reshape(N, Cout, 2 * H, 2 * Wd)
        y = y + b[None, :, None, None]
        mean = y.mean(axis=(0, 2, 3))
        var = y.var(axis=(0, 2, 3))                  # biased, like PyTorch BN train-mode forward
        y = (y - mean[None, :, None, None]) * lax.rsqrt(var + BN_EPS)[None, :, None, None]
        y = y * gamma[None, :, None, None] + beta[None, :, None, None]
        x = jax.nn.gelu(y, approximate=False)        # exact GELU, matches nn.GELU()
    return x


# ---------------- main ----------------

if __name__ == "__main__":
    in_channels, out_channels, factor = 32, 32, 4    # -> 2 upsample stages (8x8 -> 32x32)
    N, H, Wd = 2, 8, 8

    key = jax.random.PRNGKey(0)
    key, kx = jax.random.split(key)
    x = jax.random.normal(kx, (N, in_channels, H, Wd), jnp.float32)
    params = init_params(in_channels, out_channels, factor, key)

    fwd = jax.jit(upsample_stack_forward)
    out = jax.block_until_ready(fwd(x, params))

    ref = jax.block_until_ready(ref_forward(x, params))
    assert out.shape == (N, out_channels, H * factor, Wd * factor), out.shape
    np.testing.assert_allclose(np.asarray(out), np.asarray(ref), rtol=1e-3, atol=1e-3)

    print("KERNEL_OK")
</pallas_src>

<mosaic_0001>
module attributes {stable_mosaic.version = 11 : i64} {
  func.func @_stats_kernel(%arg0: i32, %arg1: memref<128x32xf32, #tpu.memory_space<vmem>>, %arg2: memref<32x128xf32, #tpu.memory_space<vmem>>, %arg3: memref<1x2x128xf32, #tpu.memory_space<vmem>>) attributes {dimension_semantics = [#tpu.dimension_semantics<parallel>], iteration_bounds = array<i64: 1>, scalar_prefetch = 0 : i64, scratch_operands = 0 : i64, tpu.core_type = #tpu.core_type<tc>, window_params = [{transform_indices = @transform_0, window_bounds = array<i64: 128, 32>}, {pipeline_mode = #tpu.pipeline_mode<synchronous>, transform_indices = @transform_1, window_bounds = array<i64: 32, 128>}, {transform_indices = @transform_2, window_bounds = array<i64: 1, 2, 128>}]} {
    %c0 = arith.constant 0 : index
    %c0_0 = arith.constant 0 : index
    %0 = vector.load %arg1[%c0, %c0_0] : memref<128x32xf32, #tpu.memory_space<vmem>>, vector<128x32xf32>
    %c0_1 = arith.constant 0 : index
    %c0_2 = arith.constant 0 : index
    %1 = vector.load %arg2[%c0_1, %c0_2] : memref<32x128xf32, #tpu.memory_space<vmem>>, vector<32x128xf32>
    %cst = arith.constant dense<0.000000e+00> : vector<128x128xf32>
    %2 = tpu.matmul %0, %1, %cst {dimension_numbers = #tpu.dot_dimension_numbers<[1], [0], [0], [1], [0, 0, 1, 1], [], []>} : vector<128x32xf32>, vector<32x128xf32>, vector<128x128xf32> -> vector<128x128xf32>
    %cst_3 = arith.constant dense<0.000000e+00> : vector<128xf32>
    %3 = vector.multi_reduction <add>, %2, %cst_3 [0] : vector<128x128xf32> to vector<128xf32>
    %4 = vector.shape_cast %3 : vector<128xf32> to vector<1x128xf32>
    %c0_4 = arith.constant 0 : index
    %c0_5 = arith.constant 0 : index
    %c0_6 = arith.constant 0 : index
    %5 = vector.load %arg3[%c0_4, %c0_5, %c0_6] : memref<1x2x128xf32, #tpu.memory_space<vmem>>, vector<1x1x128xf32>
    %6 = vector.shape_cast %5 : vector<1x1x128xf32> to vector<1x128xf32>
    %7 = vector.shape_cast %4 : vector<1x128xf32> to vector<1x1x128xf32>
    tpu.vector_store %arg3[%c0_4, %c0_5, %c0_6], %7 {strides = array<i32>} : memref<1x2x128xf32, #tpu.memory_space<vmem>>, vector<1x1x128xf32>,
    %8 = arith.mulf %2, %2 : vector<128x128xf32>
    %cst_7 = arith.constant dense<0.000000e+00> : vector<128xf32>
    %9 = vector.multi_reduction <add>, %8, %cst_7 [0] : vector<128x128xf32> to vector<128xf32>
    %10 = vector.shape_cast %9 : vector<128xf32> to vector<1x128xf32>
    %c0_8 = arith.constant 0 : index
    %c1 = arith.constant 1 : index
    %c0_9 = arith.constant 0 : index
    %11 = vector.load %arg3[%c0_8, %c1, %c0_9] : memref<1x2x128xf32, #tpu.memory_space<vmem>>, vector<1x1x128xf32>
    %12 = vector.shape_cast %11 : vector<1x1x128xf32> to vector<1x128xf32>
    %13 = vector.shape_cast %10 : vector<1x128xf32> to vector<1x1x128xf32>
    tpu.vector_store %arg3[%c0_8, %c1, %c0_9], %13 {strides = array<i32>} : memref<1x2x128xf32, #tpu.memory_space<vmem>>, vector<1x1x128xf32>,
    return
  }
  func.func @transform_0(%arg0: i32) -> (i32, i32) {
    %c0_i32 = arith.constant 0 : i32
    %c0_i32_0 = arith.constant 0 : i32
    return %arg0, %c0_i32 : i32, i32
  }
  func.func @transform_1(%arg0: i32) -> (i32, i32) {
    %c0_i32 = arith.constant 0 : i32
    %c0_i32_0 = arith.constant 0 : i32
    %c0_i32_1 = arith.constant 0 : i32
    return %c0_i32, %c0_i32_0 : i32, i32
  }
  func.func @transform_2(%arg0: i32) -> (i32, i32, i32) {
    %c0_i32 = arith.constant 0 : i32
    %c0_i32_0 = arith.constant 0 : i32
    %c0_i32_1 = arith.constant 0 : i32
    return %arg0, %c0_i32, %c0_i32_0 : i32, i32, i32
  }
}

module attributes {stable_mosaic.version = 11 : i64} {
  func.func @_fused_deconv_bn_gelu_kernel(%arg0: i32, %arg1: memref<128x32xf32, #tpu.memory_space<vmem>>, %arg2: memref<32x128xf32, #tpu.memory_space<vmem>>, %arg3: memref<1x128xf32, #tpu.memory_space<vmem>>, %arg4: memref<1x128xf32, #tpu.memory_space<vmem>>, %arg5: memref<128x128xf32, #tpu.memory_space<vmem>>) attributes {dimension_semantics = [#tpu.dimension_semantics<parallel>], iteration_bounds = array<i64: 1>, scalar_prefetch = 0 : i64, scratch_operands = 0 : i64, tpu.core_type = #tpu.core_type<tc>, window_params = [{transform_indices = @transform_0, window_bounds = array<i64: 128, 32>}, {pipeline_mode = #tpu.pipeline_mode<synchronous>, transform_indices = @transform_1, window_bounds = array<i64: 32, 128>}, {pipeline_mode = #tpu.pipeline_mode<synchronous>, transform_indices = @transform_2, window_bounds = array<i64: 1, 128>}, {pipeline_mode = #tpu.pipeline_mode<synchronous>, transform_indices = @transform_3, window_bounds = array<i64: 1, 128>}, {transform_indices = @transform_4, window_bounds = array<i64: 128, 128>}]} {
    %c0 = arith.constant 0 : index
    %c0_0 = arith.constant 0 : index
    %0 = vector.load %arg1[%c0, %c0_0] : memref<128x32xf32, #tpu.memory_space<vmem>>, vector<128x32xf32>
    %c0_1 = arith.constant 0 : index
    %c0_2 = arith.constant 0 : index
    %1 = vector.load %arg2[%c0_1, %c0_2] : memref<32x128xf32, #tpu.memory_space<vmem>>, vector<32x128xf32>
    %cst = arith.constant dense<0.000000e+00> : vector<128x128xf32>
    %2 = tpu.matmul %0, %1, %cst {dimension_numbers = #tpu.dot_dimension_numbers<[1], [0], [0], [1], [0, 0, 1, 1], [], []>} : vector<128x32xf32>, vector<32x128xf32>, vector<128x128xf32> -> vector<128x128xf32>
    %c0_3 = arith.constant 0 : index
    %c0_4 = arith.constant 0 : index
    %3 = vector.load %arg3[%c0_3, %c0_4] : memref<1x128xf32, #tpu.memory_space<vmem>>, vector<1x128xf32>
    %4 = vector.broadcast %3 : vector<1x128xf32> to vector<128x128xf32>
    %5 = arith.mulf %2, %4 : vector<128x128xf32>
    %c0_5 = arith.constant 0 : index
    %c0_6 = arith.constant 0 : index
    %6 = vector.load %arg4[%c0_5, %c0_6] : memref<1x128xf32, #tpu.memory_space<vmem>>, vector<1x128xf32>
    %7 = vector.broadcast %6 : vector<1x128xf32> to vector<128x128xf32>
    %8 = arith.addf %5, %7 : vector<128x128xf32>
    %cst_7 = arith.constant 5.000000e-01 : f32
    %9 = vector.broadcast %cst_7 : f32 to vector<128x128xf32>
    %10 = arith.mulf %9, %8 : vector<128x128xf32>
    %cst_8 = arith.constant 0.707106769 : f32
    %11 = vector.broadcast %cst_8 : f32 to vector<128x128xf32>
    %12 = arith.mulf %8, %11 : vector<128x128xf32>
    %13 = math.erf %12 : vector<128x128xf32>
    %cst_9 = arith.constant 1.000000e+00 : f32
    %14 = vector.broadcast %cst_9 : f32 to vector<128x128xf32>
    %15 = arith.addf %14, %13 : vector<128x128xf32>
    %16 = arith.mulf %10, %15 : vector<128x128xf32>
    %c0_10 = arith.constant 0 : index
    %c0_11 = arith.constant 0 : index
    %17 = vector.load %arg5[%c0_10, %c0_11] : memref<128x128xf32, #tpu.memory_space<vmem>>, vector<128x128xf32>
    tpu.vector_store %arg5[%c0_10, %c0_11], %16 {strides = array<i32>} : memref<128x128xf32, #tpu.memory_space<vmem>>, vector<128x128xf32>,
    return
  }
  func.func @transform_0(%arg0: i32) -> (i32, i32) {
    %c0_i32 = arith.constant 0 : i32
    %c0_i32_0 = arith.constant 0 : i32
    return %arg0, %c0_i32 : i32, i32
  }
  func.func @transform_1(%arg0: i32) -> (i32, i32) {
    %c0_i32 = arith.constant 0 : i32
    %c0_i32_0 = arith.constant 0 : i32
    %c0_i32_1 = arith.constant 0 : i32
    return %c0_i32, %c0_i32_0 : i32, i32
  }
  func.func @transform_2(%arg0: i32) -> (i32, i32) {
    %c0_i32 = arith.constant 0 : i32
    %c0_i32_0 = arith.constant 0 : i32
    %c0_i32_1 = arith.constant 0 : i32
    return %c0_i32, %c0_i32_0 : i32, i32
  }
  func.func @transform_3(%arg0: i32) -> (i32, i32) {
    %c0_i32 = arith.constant 0 : i32
    %c0_i32_0 = arith.constant 0 : i32
    %c0_i32_1 = arith.constant 0 : i32
    return %c0_i32, %c0_i32_0 : i32, i32
  }
  func.func @transform_4(%arg0: i32) -> (i32, i32) {
    %c0_i32 = arith.constant 0 : i32
    %c0_i32_0 = arith.constant 0 : i32
    return %arg0, %c0_i32 : i32, i32
  }
}

module attributes {stable_mosaic.version = 11 : i64} {
  func.func @_stats_kernel(%arg0: i32, %arg1: memref<512x32xf32, #tpu.memory_space<vmem>>, %arg2: memref<32x128xf32, #tpu.memory_space<vmem>>, %arg3: memref<1x2x128xf32, #tpu.memory_space<vmem>>) attributes {dimension_semantics = [#tpu.dimension_semantics<parallel>], iteration_bounds = array<i64: 1>, scalar_prefetch = 0 : i64, scratch_operands = 0 : i64, tpu.core_type = #tpu.core_type<tc>, window_params = [{transform_indices = @transform_0, window_bounds = array<i64: 512, 32>}, {pipeline_mode = #tpu.pipeline_mode<synchronous>, transform_indices = @transform_1, window_bounds = array<i64: 32, 128>}, {transform_indices = @transform_2, window_bounds = array<i64: 1, 2, 128>}]} {
    %c0 = arith.constant 0 : index
    %c0_0 = arith.constant 0 : index
    %0 = vector.load %arg1[%c0, %c0_0] : memref<512x32xf32, #tpu.memory_space<vmem>>, vector<512x32xf32>
    %c0_1 = arith.constant 0 : index
    %c0_2 = arith.constant 0 : index
    %1 = vector.load %arg2[%c0_1, %c0_2] : memref<32x128xf32, #tpu.memory_space<vmem>>, vector<32x128xf32>
    %cst = arith.constant dense<0.000000e+00> : vector<512x128xf32>
    %2 = tpu.matmul %0, %1, %cst {dimension_numbers = #tpu.dot_dimension_numbers<[1], [0], [0], [1], [0, 0, 1, 1], [], []>} : vector<512x32xf32>, vector<32x128xf32>, vector<512x128xf32> -> vector<512x128xf32>
    %cst_3 = arith.constant dense<0.000000e+00> : vector<128xf32>
    %3 = vector.multi_reduction <add>, %2, %cst_3 [0] : vector<512x128xf32> to vector<128xf32>
    %4 = vector.shape_cast %3 : vector<128xf32> to vector<1x128xf32>
    %c0_4 = arith.constant 0 : index
    %c0_5 = arith.constant 0 : index
    %c0_6 = arith.constant 0 : index
    %5 = vector.load %arg3[%c0_4, %c0_5, %c0_6] : memref<1x2x128xf32, #tpu.memory_space<vmem>>, vector<1x1x128xf32>
    %6 = vector.shape_cast %5 : vector<1x1x128xf32> to vector<1x128xf32>
    %7 = vector.shape_cast %4 : vector<1x128xf32> to vector<1x1x128xf32>
    tpu.vector_store %arg3[%c0_4, %c0_5, %c0_6], %7 {strides = array<i32>} : memref<1x2x128xf32, #tpu.memory_space<vmem>>, vector<1x1x128xf32>,
    %8 = arith.mulf %2, %2 : vector<512x128xf32>
    %cst_7 = arith.constant dense<0.000000e+00> : vector<128xf32>
    %9 = vector.multi_reduction <add>, %8, %cst_7 [0] : vector<512x128xf32> to vector<128xf32>
    %10 = vector.shape_cast %9 : vector<128xf32> to vector<1x128xf32>
    %c0_8 = arith.constant 0 : index
    %c1 = arith.constant 1 : index
    %c0_9 = arith.constant 0 : index
    %11 = vector.load %arg3[%c0_8, %c1, %c0_9] : memref<1x2x128xf32, #tpu.memory_space<vmem>>, vector<1x1x128xf32>
    %12 = vector.shape_cast %11 : vector<1x1x128xf32> to vector<1x128xf32>
    %13 = vector.shape_cast %10 : vector<1x128xf32> to vector<1x1x128xf32>
    tpu.vector_store %arg3[%c0_8, %c1, %c0_9], %13 {strides = array<i32>} : memref<1x2x128xf32, #tpu.memory_space<vmem>>, vector<1x1x128xf32>,
    return
  }
  func.func @transform_0(%arg0: i32) -> (i32, i32) {
    %c0_i32 = arith.constant 0 : i32
    %c0_i32_0 = arith.constant 0 : i32
    return %arg0, %c0_i32 : i32, i32
  }
  func.func @transform_1(%arg0: i32) -> (i32, i32) {
    %c0_i32 = arith.constant 0 : i32
    %c0_i32_0 = arith.constant 0 : i32
    %c0_i32_1 = arith.constant 0 : i32
    return %c0_i32, %c0_i32_0 : i32, i32
  }
  func.func @transform_2(%arg0: i32) -> (i32, i32, i32) {
    %c0_i32 = arith.constant 0 : i32
    %c0_i32_0 = arith.constant 0 : i32
    %c0_i32_1 = arith.constant 0 : i32
    return %arg0, %c0_i32, %c0_i32_0 : i32, i32, i32
  }
}

module attributes {stable_mosaic.version = 11 : i64} {
  func.func @_fused_deconv_bn_gelu_kernel(%arg0: i32, %arg1: memref<512x32xf32, #tpu.memory_space<vmem>>, %arg2: memref<32x128xf32, #tpu.memory_space<vmem>>, %arg3: memref<1x128xf32, #tpu.memory_space<vmem>>, %arg4: memref<1x128xf32, #tpu.memory_space<vmem>>, %arg5: memref<512x128xf32, #tpu.memory_space<vmem>>) attributes {dimension_semantics = [#tpu.dimension_semantics<parallel>], iteration_bounds = array<i64: 1>, scalar_prefetch = 0 : i64, scratch_operands = 0 : i64, tpu.core_type = #tpu.core_type<tc>, window_params = [{transform_indices = @transform_0, window_bounds = array<i64: 512, 32>}, {pipeline_mode = #tpu.pipeline_mode<synchronous>, transform_indices = @transform_1, window_bounds = array<i64: 32, 128>}, {pipeline_mode = #tpu.pipeline_mode<synchronous>, transform_indices = @transform_2, window_bounds = array<i64: 1, 128>}, {pipeline_mode = #tpu.pipeline_mode<synchronous>, transform_indices = @transform_3, window_bounds = array<i64: 1, 128>}, {transform_indices = @transform_4, window_bounds = array<i64: 512, 128>}]} {
    %c0 = arith.constant 0 : index
    %c0_0 = arith.constant 0 : index
    %0 = vector.load %arg1[%c0, %c0_0] : memref<512x32xf32, #tpu.memory_space<vmem>>, vector<512x32xf32>
    %c0_1 = arith.constant 0 : index
    %c0_2 = arith.constant 0 : index
    %1 = vector.load %arg2[%c0_1, %c0_2] : memref<32x128xf32, #tpu.memory_space<vmem>>, vector<32x128xf32>
    %cst = arith.constant dense<0.000000e+00> : vector<512x128xf32>
    %2 = tpu.matmul %0, %1, %cst {dimension_numbers = #tpu.dot_dimension_numbers<[1], [0], [0], [1], [0, 0, 1, 1], [], []>} : vector<512x32xf32>, vector<32x128xf32>, vector<512x128xf32> -> vector<512x128xf32>
    %c0_3 = arith.constant 0 : index
    %c0_4 = arith.constant 0 : index
    %3 = vector.load %arg3[%c0_3, %c0_4] : memref<1x128xf32, #tpu.memory_space<vmem>>, vector<1x128xf32>
    %4 = vector.broadcast %3 : vector<1x128xf32> to vector<512x128xf32>
    %5 = arith.mulf %2, %4 : vector<512x128xf32>
    %c0_5 = arith.constant 0 : index
    %c0_6 = arith.constant 0 : index
    %6 = vector.load %arg4[%c0_5, %c0_6] : memref<1x128xf32, #tpu.memory_space<vmem>>, vector<1x128xf32>
    %7 = vector.broadcast %6 : vector<1x128xf32> to vector<512x128xf32>
    %8 = arith.addf %5, %7 : vector<512x128xf32>
    %cst_7 = arith.constant 5.000000e-01 : f32
    %9 = vector.broadcast %cst_7 : f32 to vector<512x128xf32>
    %10 = arith.mulf %9, %8 : vector<512x128xf32>
    %cst_8 = arith.constant 0.707106769 : f32
    %11 = vector.broadcast %cst_8 : f32 to vector<512x128xf32>
    %12 = arith.mulf %8, %11 : vector<512x128xf32>
    %13 = math.erf %12 : vector<512x128xf32>
    %cst_9 = arith.constant 1.000000e+00 : f32
    %14 = vector.broadcast %cst_9 : f32 to vector<512x128xf32>
    %15 = arith.addf %14, %13 : vector<512x128xf32>
    %16 = arith.mulf %10, %15 : vector<512x128xf32>
    %c0_10 = arith.constant 0 : index
    %c0_11 = arith.constant 0 : index
    %17 = vector.load %arg5[%c0_10, %c0_11] : memref<512x128xf32, #tpu.memory_space<vmem>>, vector<512x128xf32>
    tpu.vector_store %arg5[%c0_10, %c0_11], %16 {strides = array<i32>} : memref<512x128xf32, #tpu.memory_space<vmem>>, vector<512x128xf32>,
    return
  }
  func.func @transform_0(%arg0: i32) -> (i32, i32) {
    %c0_i32 = arith.constant 0 : i32
    %c0_i32_0 = arith.constant 0 : i32
    return %arg0, %c0_i32 : i32, i32
  }
  func.func @transform_1(%arg0: i32) -> (i32, i32) {
    %c0_i32 = arith.constant 0 : i32
    %c0_i32_0 = arith.constant 0 : i32
    %c0_i32_1 = arith.constant 0 : i32
    return %c0_i32, %c0_i32_0 : i32, i32
  }
  func.func @transform_2(%arg0: i32) -> (i32, i32) {
    %c0_i32 = arith.constant 0 : i32
    %c0_i32_0 = arith.constant 0 : i32
    %c0_i32_1 = arith.constant 0 : i32
    return %c0_i32, %c0_i32_0 : i32, i32
  }
  func.func @transform_3(%arg0: i32) -> (i32, i32) {
    %c0_i32 = arith.constant 0 : i32
    %c0_i32_0 = arith.constant 0 : i32
    %c0_i32_1 = arith.constant 0 : i32
    return %c0_i32, %c0_i32_0 : i32, i32
  }
  func.func @transform_4(%arg0: i32) -> (i32, i32) {
    %c0_i32 = arith.constant 0 : i32
    %c0_i32_0 = arith.constant 0 : i32
    return %arg0, %c0_i32 : i32, i32
  }
}

</mosaic_0001>

<llo_original>
// kernel: tile.28
$region0: #{tile.28}
  #allocation0 [shape = 's32[1]{0}', space=sflag, size = 0x4, scoped, tag = 'scoped memory for tile.28']
  %s0 = inlined_call_operand.vmem [shape: f32[32], index: 0, kind: input, shape index: {}]
  %s1 = inlined_call_operand.vmem [shape: f32[4,32], index: 1, kind: output, shape index: {}]
  // Predicated region
  $region2: #{tile.28} parent=0 // pred_check
    _
  $region3: #{tile.28} parent=0 // pred_check_branch
    %3 = sbr.rel (0) target = $region5
  $region4: #{tile.28} parent=0 // pred_region
    _
  $region5: #{tile.28} parent=0 // pred_fallthru
    _
  %v4 = vld [vmem:[%s0] ss:$0 sm:$0xff]
  %5 = vst [vmem:[%s1] sm:$0xf] %v4

// kernel: tile.29
$region0: #{tile.29}
  %s0 = inlined_call_operand.vmem [shape: f32[4,32], index: 0, kind: input, shape index: {}]
  %s1 = inlined_call_operand.vmem [shape: f32[1,128], index: 1, kind: output, shape index: {}]
  $region1: #{tile.29} parent=0
    #allocation0 [shape = 'u8[4096]{0}', space=vmem, size = 0x1000, scoped, tag = 'scoped mem for output reshape']
    #allocation1 [shape = 'u8[4096]{0}', space=vmem, size = 0x1000, scoped, tag = 'scoped mem for input reshape']
    %s3 = sshllo.u32 0, 4
    %v4 = vld [vmem:[%s0] sm:%s3]
    %5 = vst [vmem:[#allocation1] sm:%s3] %v4
    %v6 = vld [vmem:[#allocation1] sm:$0x1]
    %vm7 = vcmask 261120
    %8 = vst.msk [vmem:[#allocation0] sm:$0x1] %vm7, %v6
    %s9 = scalar_lea.vmem [#allocation1], 3
    %v10 = vld [vmem:[%s9] sm:$0x1]
    %11 = vrot.lane.b32.xlu0 %v10, 96
    %v12 = vpop.permute.xlu0 %11
    %vm13 = vcmask 1048320
    %14 = vst.msk [vmem:[#allocation0] sm:$0x1] %vm13, %v12
    %s15 = scalar_lea.vmem [#allocation1], 2
    %v16 = vld [vmem:[%s15] sm:$0x1]
    %17 = vrot.lane.b32.xlu0 %v16, 64
    %v18 = vpop.permute.xlu0 %17
    %vm19 = vcmask 785920
    %20 = vst.msk [vmem:[#allocation0] sm:$0x1] %vm19, %v18
    %s21 = scalar_lea.vmem [#allocation1], 1
    %v22 = vld [vmem:[%s21] sm:$0x1]
    %23 = vrot.lane.b32.xlu0 %v22, 32
    %v24 = vpop.permute.xlu0 %23
    %vm25 = vcmask 523520
    %26 = vst.msk [vmem:[#allocation0] sm:$0x1] %vm25, %v24
    %s28 = sshllo.u32 0, 1
    %v30 = vld [vmem:[#allocation0] sm:%s28]
    %s31 = sshllo.u32 0, 1
    %32 = vst [vmem:[%s1] sm:%s31] %v30

// kernel: upsample_stack_forward.4
$region0: #{upsample_stack_forward.4}
  #allocation0 [shape = 'u32[]', space=smem, size = 0x4, offset = 0x4, fixed_abs, tag = 'smem constant byte address 0x4 - core index']
  #allocation1 [shape = 'u32[144,128]{1,0:T(1,128)}', space=vmem, size = 0x12000, scoped, tag = 'internal scratch']
  %s0 = inlined_call_operand.vmem [shape: f32[128,32], index: 0, kind: input, shape index: {}]
  %s1 = inlined_call_operand.vmem [shape: f32[32,128], index: 1, kind: input, shape index: {}]
  %s2 = inlined_call_operand.vmem [shape: f32[1,2,128], index: 2, kind: output, shape index: {}]
  %s3 = sld [smem:[#allocation0]]
  $region18: #{upsample_stack_forward.4} parent=0
    _
  %s5 = ssub.s32 1, %s3
  %s6 = scalar_select 0, %s5, %s3
  // Predicated region
  $region2: #{upsample_stack_forward.4} parent=0 // pred_check
    _
  $region3: #{upsample_stack_forward.4} parent=0 // pred_check_branch
    %8 = sbr.rel (0) target = $region5
  $region4: #{upsample_stack_forward.4} parent=0 // pred_region
    _
  $region5: #{upsample_stack_forward.4} parent=0 // pred_fallthru
    _
  // Predicated region
  $region6: #{upsample_stack_forward.4} parent=0 // pred_check
    _
  $region7: #{upsample_stack_forward.4} parent=0 // pred_check_branch
    %10 = sbr.rel (0) target = $region9
  $region8: #{upsample_stack_forward.4} parent=0 // pred_region
    _
  $region9: #{upsample_stack_forward.4} parent=0 // pred_fallthru
    _
  %v11 = vld [vmem:[%s0] sm:$0xff]
  %v12 = vld [vmem:[%s0 + $0x8] sm:$0xff]
  %v13 = vld [vmem:[%s0 + $0x10] sm:$0xff]
  %v14 = vld [vmem:[%s0 + $0x18] sm:$0xff]
  %v15 = vld [vmem:[%s0 + $0x20] sm:$0xff]
  %v16 = vld [vmem:[%s0 + $0x28] sm:$0xff]
  %v17 = vld [vmem:[%s0 + $0x30] sm:$0xff]
  %v18 = vld [vmem:[%s0 + $0x38] sm:$0xff]
  %v19 = vld [vmem:[%s0 + $0x40] sm:$0xff]
  %v20 = vld [vmem:[%s0 + $0x48] sm:$0xff]
  %v21 = vld [vmem:[%s0 + $0x50] sm:$0xff]
  %v22 = vld [vmem:[%s0 + $0x58] sm:$0xff]
  %v23 = vld [vmem:[%s0 + $0x60] sm:$0xff]
  %v24 = vld [vmem:[%s0 + $0x68] sm:$0xff]
  %v25 = vld [vmem:[%s0 + $0x70] sm:$0xff]
  %v26 = vld [vmem:[%s0 + $0x78] sm:$0xff]
  %v27 = vld [vmem:[%s1] sm:$0xff]
  %v28 = vld [vmem:[%s1 + $0x8] sm:$0xff]
  %v29 = vld [vmem:[%s1 + $0x10] sm:$0xff]
  %v30 = vld [vmem:[%s1 + $0x18] sm:$0xff]
  %vm31 = vcmask 261120
  %v33 = vsel %vm31, %v11, 0
  %v36 = vsel %vm31, %v12, 0
  %v39 = vsel %vm31, %v13, 0
  %v42 = vsel %vm31, %v14, 0
  %v45 = vsel %vm31, %v15, 0
  %v48 = vsel %vm31, %v16, 0
  %v51 = vsel %vm31, %v17, 0
  %v54 = vsel %vm31, %v18, 0
  %v57 = vsel %vm31, %v19, 0
  %v60 = vsel %vm31, %v20, 0
  %v63 = vsel %vm31, %v21, 0
  %v66 = vsel %vm31, %v22, 0
  %v69 = vsel %vm31, %v23, 0
  %v72 = vsel %vm31, %v24, 0
  %v75 = vsel %vm31, %v25, 0
  %v78 = vsel %vm31, %v26, 0
  %80 = vmatprep.subr.mxu0 0.0
  %81 = vmatpush1.msra.mxu0 %v27
  %82 = vmatprep.subr.mxu0 0.0
  %83 = vmatpush1.msra.mxu0 %v28
  %84 = vmatprep.subr.mxu0 0.0
  %85 = vmatpush1.msra.mxu0 %v29
  %86 = vmatprep.subr.mxu0 0.0
  %87 = vmatpush1.msra.mxu0 %v30
  %88 = vmatprep.subr.mxu0 0.0
  %89 = vmatpush1.msra.mxu0 0.0
  %90 = vmatprep.subr.mxu0 0.0
  %91 = vmatpush1.msra.mxu0 0.0
  %92 = vmatprep.subr.mxu0 0.0
  %93 = vmatpush1.msra.mxu0 0.0
  %94 = vmatprep.subr.mxu0 0.0
  %95 = vmatpush1.msra.mxu0 0.0
  %96 = vmatprep.subr.mxu0 0.0
  %97 = vmatpush1.msra.mxu0 0.0
  %98 = vmatprep.subr.mxu0 0.0
  %99 = vmatpush1.msra.mxu0 0.0
  %100 = vmatprep.subr.mxu0 0.0
  %101 = vmatpush1.msra.mxu0 0.0
  %102 = vmatprep.subr.mxu0 0.0
  %103 = vmatpush1.msra.mxu0 0.0
  %104 = vmatprep.subr.mxu0 0.0
  %105 = vmatpush1.msra.mxu0 0.0
  %106 = vmatprep.subr.mxu0 0.0
  %107 = vmatpush1.msra.mxu0 0.0
  %108 = vmatprep.subr.mxu0 0.0
  %109 = vmatpush1.msra.mxu0 0.0
  %110 = vmatprep.subr.mxu0 0.0
  %111 = vmatpush1.msra.mxu0 0.0
  %112 = vmatprep.subr.mxu0 0.0
  %113 = vmatpush1.msra.mxu0 0.0
  %114 = vmatprep.subr.mxu0 0.0
  %115 = vmatpush1.msra.mxu0 0.0
  %116 = vmatprep.subr.mxu0 0.0
  %117 = vmatpush1.msra.mxu0 0.0
  %118 = vmatprep.subr.mxu0 0.0
  %119 = vmatpush1.msra.mxu0 0.0
  %120 = vmatprep.subr.mxu0 0.0
  %121 = vmatpush1.msra.mxu0 0.0
  %122 = vmatprep.subr.mxu0 0.0
  %123 = vmatpush1.msra.mxu0 0.0
  %124 = vmatprep.subr.mxu0 0.0
  %125 = vmatpush1.msra.mxu0 0.0
  %126 = vmatprep.subr.mxu0 0.0
  %127 = vmatpush1.msra.mxu0 0.0
  %128 = vmatprep.subr.mxu0 0.0
  %129 = vmatpush1.msra.mxu0 0.0
  %130 = vmatprep.subr.mxu0 0.0
  %131 = vmatpush1.msra.mxu0 0.0
  %132 = vmatprep.subr.mxu0 0.0
  %133 = vmatpush1.msra.mxu0 0.0
  %134 = vmatprep.subr.mxu0 0.0
  %135 = vmatpush1.msra.mxu0 0.0
  %136 = vmatprep.subr.mxu0 0.0
  %137 = vmatpush1.msra.mxu0 0.0
  %138 = vmatprep.subr.mxu0 0.0
  %139 = vmatpush1.msra.mxu0 0.0
  %140 = vmatprep.subr.mxu0 0.0
  %141 = vmatpush1.msra.mxu0 0.0
  %142 = vmatprep.subr.mxu0 0.0
  %143 = vmatpush1.msra.mxu0 0.0
  %144 = vmatprep.mubr.f32.mxu0 0.0
  %145 = vmatmul.mubr.f32.gmra.mrb[0].mxu0 %v33
  %v146 = vpop.f32.mrb[0].mxu0
  %v147 = vadd.f32 0.0, %v146
  %v148 = vpop.f32.mrb[0].mxu0
  %149 = vmatprep.mubr.f32.mxu0 0.0
  %150 = vmatmul.mubr.f32.gmra.mrb[0].mxu0 %v36
  %v151 = vpop.f32.mrb[0].mxu0
  %v152 = vadd.f32 0.0, %v151
  %v153 = vpop.f32.mrb[0].mxu0
  %154 = vmatprep.mubr.f32.mxu0 0.0
  %155 = vmatmul.mubr.f32.gmra.mrb[0].mxu0 %v39
  %v156 = vpop.f32.mrb[0].mxu0
  %v157 = vadd.f32 0.0, %v156
  %v158 = vpop.f32.mrb[0].mxu0
  %159 = vmatprep.mubr.f32.mxu0 0.0
  %160 = vmatmul.mubr.f32.gmra.mrb[0].mxu0 %v42
  %v161 = vpop.f32.mrb[0].mxu0
  %v162 = vadd.f32 0.0, %v161
  %v163 = vpop.f32.mrb[0].mxu0
  %164 = vmatprep.mubr.f32.mxu0 0.0
  %165 = vmatmul.mubr.f32.gmra.mrb[0].mxu0 %v45
  %v166 = vpop.f32.mrb[0].mxu0
  %v167 = vadd.f32 0.0, %v166
  %v168 = vpop.f32.mrb[0].mxu0
  %169 = vmatprep.mubr.f32.mxu0 0.0
  %170 = vmatmul.mubr.f32.gmra.mrb[0].mxu0 %v48
  %v171 = vpop.f32.mrb[0].mxu0
  %v172 = vadd.f32 0.0, %v171
  %v173 = vpop.f32.mrb[0].mxu0
  %174 = vmatprep.mubr.f32.mxu0 0.0
  %175 = vmatmul.mubr.f32.gmra.mrb[0].mxu0 %v51
  %v176 = vpop.f32.mrb[0].mxu0
  %v177 = vadd.f32 0.0, %v176
  %v178 = vpop.f32.mrb[0].mxu0
  %179 = vmatprep.mubr.f32.mxu0 0.0
  %180 = vmatmul.mubr.f32.gmra.mrb[0].mxu0 %v54
  %v181 = vpop.f32.mrb[0].mxu0
  %v182 = vadd.f32 0.0, %v181
  %v183 = vpop.f32.mrb[0].mxu0
  %184 = vmatprep.mubr.f32.mxu0 0.0
  %185 = vmatmul.mubr.f32.gmra.mrb[0].mxu0 %v57
  %v186 = vpop.f32.mrb[0].mxu0
  %v187 = vadd.f32 0.0, %v186
  %v188 = vpop.f32.mrb[0].mxu0
  %189 = vmatprep.mubr.f32.mxu0 0.0
  %190 = vmatmul.mubr.f32.gmra.mrb[0].mxu0 %v60
  %v191 = vpop.f32.mrb[0].mxu0
  %v192 = vadd.f32 0.0, %v191
  %v193 = vpop.f32.mrb[0].mxu0
  %194 = vmatprep.mubr.f32.mxu0 0.0
  %195 = vmatmul.mubr.f32.gmra.mrb[0].mxu0 %v63
  %v196 = vpop.f32.mrb[0].mxu0
  %v197 = vadd.f32 0.0, %v196
  %v198 = vpop.f32.mrb[0].mxu0
  %199 = vmatprep.mubr.f32.mxu0 0.0
  %200 = vmatmul.mubr.f32.gmra.mrb[0].mxu0 %v66
  %v201 = vpop.f32.mrb[0].mxu0
  %v202 = vadd.f32 0.0, %v201
  %v203 = vpop.f32.mrb[0].mxu0
  %204 = vmatprep.mubr.f32.mxu0 0.0
  %205 = vmatmul.mubr.f32.gmra.mrb[0].mxu0 %v69
  %v206 = vpop.f32.mrb[0].mxu0
  %v207 = vadd.f32 0.0, %v206
  %v208 = vpop.f32.mrb[0].mxu0
  %209 = vmatprep.mubr.f32.mxu0 0.0
  %210 = vmatmul.mubr.f32.gmra.mrb[0].mxu0 %v72
  %v211 = vpop.f32.mrb[0].mxu0
  %v212 = vadd.f32 0.0, %v211
  %v213 = vpop.f32.mrb[0].mxu0
  %214 = vmatprep.mubr.f32.mxu0 0.0
  %215 = vmatmul.mubr.f32.gmra.mrb[0].mxu0 %v75
  %v216 = vpop.f32.mrb[0].mxu0
  %v217 = vadd.f32 0.0, %v216
  %v218 = vpop.f32.mrb[0].mxu0
  %219 = vmatprep.mubr.f32.mxu0 0.0
  %220 = vmatmul.mubr.f32.gmra.mrb[0].mxu0 %v78
  %v221 = vpop.f32.mrb[0].mxu0
  %v222 = vadd.f32 0.0, %v221
  %v223 = vpop.f32.mrb[0].mxu0
  %224 = vdwg.mxu0
  %v225 = vadd.f32 %v147, %v152
  %v226 = vadd.f32 %v225, %v157
  %v227 = vadd.f32 %v226, %v162
  %v228 = vadd.f32 %v227, %v167
  %v229 = vadd.f32 %v228, %v172
  %v230 = vadd.f32 %v229, %v177
  %v231 = vadd.f32 %v230, %v182
  %v232 = vadd.f32 %v231, %v187
  %v233 = vadd.f32 %v232, %v192
  %v234 = vadd.f32 %v233, %v197
  %v235 = vadd.f32 %v234, %v202
  %v236 = vadd.f32 %v235, %v207
  %v237 = vadd.f32 %v236, %v212
  %v238 = vadd.f32 %v237, %v217
  %v239 = vadd.f32 %v238, %v222
  %v240 = vrot.slane %v239, 4
  %v241 = vadd.f32 %v239, %v240
  %v242 = vrot.slane %v241, 2
  %v243 = vadd.f32 %v241, %v242
  %v244 = vrot.slane %v243, 1
  %v245 = vadd.f32 %v243, %v244
  %246 = vst [vmem:[%s2] sm:$0x1] %v245
  %v247 = vmul.f32 %v147, %v147
  %v248 = vmul.f32 %v152, %v152
  %v249 = vmul.f32 %v157, %v157
  %v250 = vmul.f32 %v162, %v162
  %v251 = vmul.f32 %v167, %v167
  %v252 = vmul.f32 %v172, %v172
  %v253 = vmul.f32 %v177, %v177
  %v254 = vmul.f32 %v182, %v182
  %v255 = vmul.f32 %v187, %v187
  %v256 = vmul.f32 %v192, %v192
  %v257 = vmul.f32 %v197, %v197
  %v258 = vmul.f32 %v202, %v202
  %v259 = vmul.f32 %v207, %v207
  %v260 = vmul.f32 %v212, %v212
  %v261 = vmul.f32 %v217, %v217
  %v262 = vmul.f32 %v222, %v222
  %v263 = vadd.f32 %v247, %v248
  %v264 = vadd.f32 %v263, %v249
  %v265 = vadd.f32 %v264, %v250
  %v266 = vadd.f32 %v265, %v251
  %v267 = vadd.f32 %v266, %v252
  %v268 = vadd.f32 %v267, %v253
  %v269 = vadd.f32 %v268, %v254
  %v270 = vadd.f32 %v269, %v255
  %v271 = vadd.f32 %v270, %v256
  %v272 = vadd.f32 %v271, %v257
  %v273 = vadd.f32 %v272, %v258
  %v274 = vadd.f32 %v273, %v259
  %v275 = vadd.f32 %v274, %v260
  %v276 = vadd.f32 %v275, %v261
  %v277 = vadd.f32 %v276, %v262
  %v278 = vrot.slane %v277, 4
  %v279 = vadd.f32 %v277, %v278
  %v280 = vrot.slane %v279, 2
  %v281 = vadd.f32 %v279, %v280
  %v282 = vrot.slane %v281, 1
  %v283 = vadd.f32 %v281, %v282
  %284 = vst [vmem:[%s2 + $0x1] sm:$0x1] %v283
  // Predicated region
  $region10: #{upsample_stack_forward.4} parent=0 // pred_check
    _
  $region11: #{upsample_stack_forward.4} parent=0 // pred_check_branch
    %286 = sbr.rel (0) target = $region13
  $region12: #{upsample_stack_forward.4} parent=0 // pred_region
    _
  $region13: #{upsample_stack_forward.4} parent=0 // pred_fallthru
    _
  // Predicated region
  $region14: #{upsample_stack_forward.4} parent=0 // pred_check
    _
  $region15: #{upsample_stack_forward.4} parent=0 // pred_check_branch
    %288 = sbr.rel (0) target = $region17
  $region16: #{upsample_stack_forward.4} parent=0 // pred_region
    _
  $region17: #{upsample_stack_forward.4} parent=0 // pred_fallthru
    _

// kernel: upsample_stack_forward.5
$region0: #{upsample_stack_forward.5}
  #allocation0 [shape = 'u32[]', space=smem, size = 0x4, offset = 0x4, fixed_abs, tag = 'smem constant byte address 0x4 - core index']
  #allocation1 [shape = 'u32[144,128]{1,0:T(1,128)}', space=vmem, size = 0x12000, scoped, tag = 'internal scratch']
  %s0 = inlined_call_operand.vmem [shape: f32[128,32], index: 0, kind: input, shape index: {}]
  %s1 = inlined_call_operand.vmem [shape: f32[32,128], index: 1, kind: input, shape index: {}]
  %s2 = inlined_call_operand.vmem [shape: f32[1,128], index: 2, kind: input, shape index: {}]
  %s3 = inlined_call_operand.vmem [shape: f32[1,128], index: 3, kind: input, shape index: {}]
  %s4 = inlined_call_operand.vmem [shape: f32[128,128], index: 4, kind: output, shape index: {}]
  %s5 = sld [smem:[#allocation0]]
  $region26: #{upsample_stack_forward.5} parent=0
    _
  %s7 = ssub.s32 1, %s5
  %s8 = scalar_select 0, %s7, %s5
  // Predicated region
  $region2: #{upsample_stack_forward.5} parent=0 // pred_check
    _
  $region3: #{upsample_stack_forward.5} parent=0 // pred_check_branch
    %10 = sbr.rel (0) target = $region5
  $region4: #{upsample_stack_forward.5} parent=0 // pred_region
    _
  $region5: #{upsample_stack_forward.5} parent=0 // pred_fallthru
    _
  // Predicated region
  $region6: #{upsample_stack_forward.5} parent=0 // pred_check
    _
  $region7: #{upsample_stack_forward.5} parent=0 // pred_check_branch
    %12 = sbr.rel (0) target = $region9
  $region8: #{upsample_stack_forward.5} parent=0 // pred_region
    _
  $region9: #{upsample_stack_forward.5} parent=0 // pred_fallthru
    _
  // Predicated region
  $region10: #{upsample_stack_forward.5} parent=0 // pred_check
    _
  $region11: #{upsample_stack_forward.5} parent=0 // pred_check_branch
    %14 = sbr.rel (0) target = $region13
  $region12: #{upsample_stack_forward.5} parent=0 // pred_region
    _
  $region13: #{upsample_stack_forward.5} parent=0 // pred_fallthru
    _
  // Predicated region
  $region14: #{upsample_stack_forward.5} parent=0 // pred_check
    _
  $region15: #{upsample_stack_forward.5} parent=0 // pred_check_branch
    %16 = sbr.rel (0) target = $region17
  $region16: #{upsample_stack_forward.5} parent=0 // pred_region
    _
  $region17: #{upsample_stack_forward.5} parent=0 // pred_fallthru
    _
  %v17 = vld [vmem:[%s0] sm:$0xff]
  %v18 = vld [vmem:[%s0 + $0x8] sm:$0xff]
  %v19 = vld [vmem:[%s0 + $0x10] sm:$0xff]
  %v20 = vld [vmem:[%s0 + $0x18] sm:$0xff]
  %v21 = vld [vmem:[%s0 + $0x20] sm:$0xff]
  %v22 = vld [vmem:[%s0 + $0x28] sm:$0xff]
  %v23 = vld [vmem:[%s0 + $0x30] sm:$0xff]
  %v24 = vld [vmem:[%s0 + $0x38] sm:$0xff]
  %v25 = vld [vmem:[%s0 + $0x40] sm:$0xff]
  %v26 = vld [vmem:[%s0 + $0x48] sm:$0xff]
  %v27 = vld [vmem:[%s0 + $0x50] sm:$0xff]
  %v28 = vld [vmem:[%s0 + $0x58] sm:$0xff]
  %v29 = vld [vmem:[%s0 + $0x60] sm:$0xff]
  %v30 = vld [vmem:[%s0 + $0x68] sm:$0xff]
  %v31 = vld [vmem:[%s0 + $0x70] sm:$0xff]
  %v32 = vld [vmem:[%s0 + $0x78] sm:$0xff]
  %v33 = vld [vmem:[%s1] sm:$0xff]
  %v34 = vld [vmem:[%s1 + $0x8] sm:$0xff]
  %v35 = vld [vmem:[%s1 + $0x10] sm:$0xff]
  %v36 = vld [vmem:[%s1 + $0x18] sm:$0xff]
  %vm37 = vcmask 261120
  %v39 = vsel %vm37, %v17, 0
  %v42 = vsel %vm37, %v18, 0
  %v45 = vsel %vm37, %v19, 0
  %v48 = vsel %vm37, %v20, 0
  %v51 = vsel %vm37, %v21, 0
  %v54 = vsel %vm37, %v22, 0
  %v57 = vsel %vm37, %v23, 0
  %v60 = vsel %vm37, %v24, 0
  %v63 = vsel %vm37, %v25, 0
  %v66 = vsel %vm37, %v26, 0
  %v69 = vsel %vm37, %v27, 0
  %v72 = vsel %vm37, %v28, 0
  %v75 = vsel %vm37, %v29, 0
  %v78 = vsel %vm37, %v30, 0
  %v81 = vsel %vm37, %v31, 0
  %v84 = vsel %vm37, %v32, 0
  %86 = vmatprep.subr.mxu0 0.0
  %87 = vmatpush1.msra.mxu0 %v33
  %88 = vmatprep.subr.mxu0 0.0
  %89 = vmatpush1.msra.mxu0 %v34
  %90 = vmatprep.subr.mxu0 0.0
  %91 = vmatpush1.msra.mxu0 %v35
  %92 = vmatprep.subr.mxu0 0.0
  %93 = vmatpush1.msra.mxu0 %v36
  %94 = vmatprep.subr.mxu0 0.0
  %95 = vmatpush1.msra.mxu0 0.0
  %96 = vmatprep.subr.mxu0 0.0
  %97 = vmatpush1.msra.mxu0 0.0
  %98 = vmatprep.subr.mxu0 0.0
  %99 = vmatpush1.msra.mxu0 0.0
  %100 = vmatprep.subr.mxu0 0.0
  %101 = vmatpush1.msra.mxu0 0.0
  %102 = vmatprep.subr.mxu0 0.0
  %103 = vmatpush1.msra.mxu0 0.0
  %104 = vmatprep.subr.mxu0 0.0
  %105 = vmatpush1.msra.mxu0 0.0
  %106 = vmatprep.subr.mxu0 0.0
  %107 = vmatpush1.msra.mxu0 0.0
  %108 = vmatprep.subr.mxu0 0.0
  %109 = vmatpush1.msra.mxu0 0.0
  %110 = vmatprep.subr.mxu0 0.0
  %111 = vmatpush1.msra.mxu0 0.0
  %112 = vmatprep.subr.mxu0 0.0
  %113 = vmatpush1.msra.mxu0 0.0
  %114 = vmatprep.subr.mxu0 0.0
  %115 = vmatpush1.msra.mxu0 0.0
  %116 = vmatprep.subr.mxu0 0.0
  %117 = vmatpush1.msra.mxu0 0.0
  %118 = vmatprep.subr.mxu0 0.0
  %119 = vmatpush1.msra.mxu0 0.0
  %120 = vmatprep.subr.mxu0 0.0
  %121 = vmatpush1.msra.mxu0 0.0
  %122 = vmatprep.subr.mxu0 0.0
  %123 = vmatpush1.msra.mxu0 0.0
  %124 = vmatprep.subr.mxu0 0.0
  %125 = vmatpush1.msra.mxu0 0.0
  %126 = vmatprep.subr.mxu0 0.0
  %127 = vmatpush1.msra.mxu0 0.0
  %128 = vmatprep.subr.mxu0 0.0
  %129 = vmatpush1.msra.mxu0 0.0
  %130 = vmatprep.subr.mxu0 0.0
  %131 = vmatpush1.msra.mxu0 0.0
  %132 = vmatprep.subr.mxu0 0.0
  %133 = vmatpush1.msra.mxu0 0.0
  %134 = vmatprep.subr.mxu0 0.0
  %135 = vmatpush1.msra.mxu0 0.0
  %136 = vmatprep.subr.mxu0 0.0
  %137 = vmatpush1.msra.mxu0 0.0
  %138 = vmatprep.subr.mxu0 0.0
  %139 = vmatpush1.msra.mxu0 0.0
  %140 = vmatprep.subr.mxu0 0.0
  %141 = vmatpush1.msra.mxu0 0.0
  %142 = vmatprep.subr.mxu0 0.0
  %143 = vmatpush1.msra.mxu0 0.0
  %144 = vmatprep.subr.mxu0 0.0
  %145 = vmatpush1.msra.mxu0 0.0
  %146 = vmatprep.subr.mxu0 0.0
  %147 = vmatpush1.msra.mxu0 0.0
  %148 = vmatprep.subr.mxu0 0.0
  %149 = vmatpush1.msra.mxu0 0.0
  %150 = vmatprep.mubr.f32.mxu0 0.0
  %151 = vmatmul.mubr.f32.gmra.mrb[0].mxu0 %v39
  %v152 = vpop.f32.mrb[0].mxu0
  %v153 = vadd.f32 0.0, %v152
  %v154 = vpop.f32.mrb[0].mxu0
  %155 = vmatprep.mubr.f32.mxu0 0.0
  %156 = vmatmul.mubr.f32.gmra.mrb[0].mxu0 %v42
  %v157 = vpop.f32.mrb[0].mxu0
  %v158 = vadd.f32 0.0, %v157
  %v159 = vpop.f32.mrb[0].mxu0
  %160 = vmatprep.mubr.f32.mxu0 0.0
  %161 = vmatmul.mubr.f32.gmra.mrb[0].mxu0 %v45
  %v162 = vpop.f32.mrb[0].mxu0
  %v163 = vadd.f32 0.0, %v162
  %v164 = vpop.f32.mrb[0].mxu0
  %165 = vmatprep.mubr.f32.mxu0 0.0
  %166 = vmatmul.mubr.f32.gmra.mrb[0].mxu0 %v48
  %v167 = vpop.f32.mrb[0].mxu0
  %v168 = vadd.f32 0.0, %v167
  %v169 = vpop.f32.mrb[0].mxu0
  %170 = vmatprep.mubr.f32.mxu0 0.0
  %171 = vmatmul.mubr.f32.gmra.mrb[0].mxu0 %v51
  %v172 = vpop.f32.mrb[0].mxu0
  %v173 = vadd.f32 0.0, %v172
  %v174 = vpop.f32.mrb[0].mxu0
  %175 = vmatprep.mubr.f32.mxu0 0.0
  %176 = vmatmul.mubr.f32.gmra.mrb[0].mxu0 %v54
  %v177 = vpop.f32.mrb[0].mxu0
  %v178 = vadd.f32 0.0, %v177
  %v179 = vpop.f32.mrb[0].mxu0
  %180 = vmatprep.mubr.f32.mxu0 0.0
  %181 = vmatmul.mubr.f32.gmra.mrb[0].mxu0 %v57
  %v182 = vpop.f32.mrb[0].mxu0
  %v183 = vadd.f32 0.0, %v182
  %v184 = vpop.f32.mrb[0].mxu0
  %185 = vmatprep.mubr.f32.mxu0 0.0
  %186 = vmatmul.mubr.f32.gmra.mrb[0].mxu0 %v60
  %v187 = vpop.f32.mrb[0].mxu0
  %v188 = vadd.f32 0.0, %v187
  %v189 = vpop.f32.mrb[0].mxu0
  %190 = vmatprep.mubr.f32.mxu0 0.0
  %191 = vmatmul.mubr.f32.gmra.mrb[0].mxu0 %v63
  %v192 = vpop.f32.mrb[0].mxu0
  %v193 = vadd.f32 0.0, %v192
  %v194 = vpop.f32.mrb[0].mxu0
  %195 = vmatprep.mubr.f32.mxu0 0.0
  %196 = vmatmul.mubr.f32.gmra.mrb[0].mxu0 %v66
  %v197 = vpop.f32.mrb[0].mxu0
  %v198 = vadd.f32 0.0, %v197
  %v199 = vpop.f32.mrb[0].mxu0
  %200 = vmatprep.mubr.f32.mxu0 0.0
  %201 = vmatmul.mubr.f32.gmra.mrb[0].mxu0 %v69
  %v202 = vpop.f32.mrb[0].mxu0
  %v203 = vadd.f32 0.0, %v202
  %v204 = vpop.f32.mrb[0].mxu0
  %205 = vmatprep.mubr.f32.mxu0 0.0
  %206 = vmatmul.mubr.f32.gmra.mrb[0].mxu0 %v72
  %v207 = vpop.f32.mrb[0].mxu0
  %v208 = vadd.f32 0.0, %v207
  %v209 = vpop.f32.mrb[0].mxu0
  %210 = vmatprep.mubr.f32.mxu0 0.0
  %211 = vmatmul.mubr.f32.gmra.mrb[0].mxu0 %v75
  %v212 = vpop.f32.mrb[0].mxu0
  %v213 = vadd.f32 0.0, %v212
  %v214 = vpop.f32.mrb[0].mxu0
  %215 = vmatprep.mubr.f32.mxu0 0.0
  %216 = vmatmul.mubr.f32.gmra.mrb[0].mxu0 %v78
  %v217 = vpop.f32.mrb[0].mxu0
  %v218 = vadd.f32 0.0, %v217
  %v219 = vpop.f32.mrb[0].mxu0
  %220 = vmatprep.mubr.f32.mxu0 0.0
  %221 = vmatmul.mubr.f32.gmra.mrb[0].mxu0 %v81
  %v222 = vpop.f32.mrb[0].mxu0
  %v223 = vadd.f32 0.0, %v222
  %v224 = vpop.f32.mrb[0].mxu0
  %225 = vmatprep.mubr.f32.mxu0 0.0
  %226 = vmatmul.mubr.f32.gmra.mrb[0].mxu0 %v84
  %v227 = vpop.f32.mrb[0].mxu0
  %v228 = vadd.f32 0.0, %v227
  %v229 = vpop.f32.mrb[0].mxu0
  %230 = vdwg.mxu0
  %v231 = vld [vmem:[%s2] sm:$0x1]
  %v233 = vlaneseq
  %v234 = vshrl.u32 %v233, 7
  %v235 = vsub.s32 0, %v234
  %v236 = vrot.slane %v231, %v235
  %v238 = vmul.f32 %v153, %v236
  %v239 = vmul.f32 %v158, %v236
  %v240 = vmul.f32 %v163, %v236
  %v241 = vmul.f32 %v168, %v236
  %v242 = vmul.f32 %v173, %v236
  %v243 = vmul.f32 %v178, %v236
  %v244 = vmul.f32 %v183, %v236
  %v245 = vmul.f32 %v188, %v236
  %v246 = vmul.f32 %v193, %v236
  %v247 = vmul.f32 %v198, %v236
  %v248 = vmul.f32 %v203, %v236
  %v249 = vmul.f32 %v208, %v236
  %v250 = vmul.f32 %v213, %v236
  %v251 = vmul.f32 %v218, %v236
  %v252 = vmul.f32 %v223, %v236
  %v253 = vmul.f32 %v228, %v236
  %v254 = vld [vmem:[%s3] sm:$0x1]
  %v256 = vlaneseq
  %v257 = vshrl.u32 %v256, 7
  %v258 = vsub.s32 0, %v257
  %v259 = vrot.slane %v254, %v258
  %v261 = vadd.f32 %v238, %v259
  %v262 = vadd.f32 %v239, %v259
  %v263 = vadd.f32 %v240, %v259
  %v264 = vadd.f32 %v241, %v259
  %v265 = vadd.f32 %v242, %v259
  %v266 = vadd.f32 %v243, %v259
  %v267 = vadd.f32 %v244, %v259
  %v268 = vadd.f32 %v245, %v259
  %v269 = vadd.f32 %v246, %v259
  %v270 = vadd.f32 %v247, %v259
  %v271 = vadd.f32 %v248, %v259
  %v272 = vadd.f32 %v249, %v259
  %v273 = vadd.f32 %v250, %v259
  %v274 = vadd.f32 %v251, %v259
  %v275 = vadd.f32 %v252, %v259
  %v276 = vadd.f32 %v253, %v259
  %v277 = vmul.f32 %v261, 0.5
  %v278 = vmul.f32 %v262, 0.5
  %v279 = vmul.f32 %v263, 0.5
  %v280 = vmul.f32 %v264, 0.5
  %v281 = vmul.f32 %v265, 0.5
  %v282 = vmul.f32 %v266, 0.5
  %v283 = vmul.f32 %v267, 0.5
  %v284 = vmul.f32 %v268, 0.5
  %v285 = vmul.f32 %v269, 0.5
  %v286 = vmul.f32 %v270, 0.5
  %v287 = vmul.f32 %v271, 0.5
  %v288 = vmul.f32 %v272, 0.5
  %v289 = vmul.f32 %v273, 0.5
  %v290 = vmul.f32 %v274, 0.5
  %v291 = vmul.f32 %v275, 0.5
  %v292 = vmul.f32 %v276, 0.5
  %v293 = vmul.f32 %v261, 0.70710677
  %v294 = vmul.f32 %v262, 0.70710677
  %v295 = vmul.f32 %v263, 0.70710677
  %v296 = vmul.f32 %v264, 0.70710677
  %v297 = vmul.f32 %v265, 0.70710677
  %v298 = vmul.f32 %v266, 0.70710677
  %v299 = vmul.f32 %v267, 0.70710677
  %v300 = vmul.f32 %v268, 0.70710677
  %v301 = vmul.f32 %v269, 0.70710677
  %v302 = vmul.f32 %v270, 0.70710677
  %v303 = vmul.f32 %v271, 0.70710677
  %v304 = vmul.f32 %v272, 0.70710677
  %v305 = vmul.f32 %v273, 0.70710677
  %v306 = vmul.f32 %v274, 0.70710677
  %v307 = vmul.f32 %v275, 0.70710677
  %v308 = vmul.f32 %v276, 0.70710677
  %v309 = verf.f32.pop %v293
  %v310 = verf.f32.pop %v294
  %v311 = verf.f32.pop %v295
  %v312 = verf.f32.pop %v296
  %v313 = verf.f32.pop %v297
  %v314 = verf.f32.pop %v298
  %v315 = verf.f32.pop %v299
  %v316 = verf.f32.pop %v300
  %v317 = verf.f32.pop %v301
  %v318 = verf.f32.pop %v302
  %v319 = verf.f32.pop %v303
  %v320 = verf.f32.pop %v304
  %v321 = verf.f32.pop %v305
  %v322 = verf.f32.pop %v306
  %v323 = verf.f32.pop %v307
  %v324 = verf.f32.pop %v308
  %v325 = vadd.f32 %v309, 1.0
  %v326 = vadd.f32 %v310, 1.0
  %v327 = vadd.f32 %v311, 1.0
  %v328 = vadd.f32 %v312, 1.0
  %v329 = vadd.f32 %v313, 1.0
  %v330 = vadd.f32 %v314, 1.0
  %v331 = vadd.f32 %v315, 1.0
  %v332 = vadd.f32 %v316, 1.0
  %v333 = vadd.f32 %v317, 1.0
  %v334 = vadd.f32 %v318, 1.0
  %v335 = vadd.f32 %v319, 1.0
  %v336 = vadd.f32 %v320, 1.0
  %v337 = vadd.f32 %v321, 1.0
  %v338 = vadd.f32 %v322, 1.0
  %v339 = vadd.f32 %v323, 1.0
  %v340 = vadd.f32 %v324, 1.0
  %v341 = vmul.f32 %v277, %v325
  %v342 = vmul.f32 %v278, %v326
  %v343 = vmul.f32 %v279, %v327
  %v344 = vmul.f32 %v280, %v328
  %v345 = vmul.f32 %v281, %v329
  %v346 = vmul.f32 %v282, %v330
  %v347 = vmul.f32 %v283, %v331
  %v348 = vmul.f32 %v284, %v332
  %v349 = vmul.f32 %v285, %v333
  %v350 = vmul.f32 %v286, %v334
  %v351 = vmul.f32 %v287, %v335
  %v352 = vmul.f32 %v288, %v336
  %v353 = vmul.f32 %v289, %v337
  %v354 = vmul.f32 %v290, %v338
  %v355 = vmul.f32 %v291, %v339
  %v356 = vmul.f32 %v292, %v340
  %357 = vst [vmem:[%s4] sm:$0xff] %v341
  %358 = vst [vmem:[%s4 + $0x8] sm:$0xff] %v342
  %359 = vst [vmem:[%s4 + $0x10] sm:$0xff] %v343
  %360 = vst [vmem:[%s4 + $0x18] sm:$0xff] %v344
  %361 = vst [vmem:[%s4 + $0x20] sm:$0xff] %v345
  %362 = vst [vmem:[%s4 + $0x28] sm:$0xff] %v346
  %363 = vst [vmem:[%s4 + $0x30] sm:$0xff] %v347
  %364 = vst [vmem:[%s4 + $0x38] sm:$0xff] %v348
  %365 = vst [vmem:[%s4 + $0x40] sm:$0xff] %v349
  %366 = vst [vmem:[%s4 + $0x48] sm:$0xff] %v350
  %367 = vst [vmem:[%s4 + $0x50] sm:$0xff] %v351
  %368 = vst [vmem:[%s4 + $0x58] sm:$0xff] %v352
  %369 = vst [vmem:[%s4 + $0x60] sm:$0xff] %v353
  %370 = vst [vmem:[%s4 + $0x68] sm:$0xff] %v354
  %371 = vst [vmem:[%s4 + $0x70] sm:$0xff] %v355
  %372 = vst [vmem:[%s4 + $0x78] sm:$0xff] %v356
  // Predicated region
  $region18: #{upsample_stack_forward.5} parent=0 // pred_check
    _
  $region19: #{upsample_stack_forward.5} parent=0 // pred_check_branch
    %374 = sbr.rel (0) target = $region21
  $region20: #{upsample_stack_forward.5} parent=0 // pred_region
    _
  $region21: #{upsample_stack_forward.5} parent=0 // pred_fallthru
    _
  // Predicated region
  $region22: #{upsample_stack_forward.5} parent=0 // pred_check
    _
  $region23: #{upsample_stack_forward.5} parent=0 // pred_check_branch
    %376 = sbr.rel (0) target = $region25
  $region24: #{upsample_stack_forward.5} parent=0 // pred_region
    _
  $region25: #{upsample_stack_forward.5} parent=0 // pred_fallthru
    _

// kernel: upsample_stack_forward.6
$region0: #{upsample_stack_forward.6}
  #allocation0 [shape = 'u32[]', space=smem, size = 0x4, offset = 0x4, fixed_abs, tag = 'smem constant byte address 0x4 - core index']
  #allocation1 [shape = 'u32[144,128]{1,0:T(1,128)}', space=vmem, size = 0x12000, scoped, tag = 'internal scratch']
  %s0 = inlined_call_operand.vmem [shape: f32[512,32], index: 0, kind: input, shape index: {}]
  %s1 = inlined_call_operand.vmem [shape: f32[32,128], index: 1, kind: input, shape index: {}]
  %s2 = inlined_call_operand.vmem [shape: f32[1,2,128], index: 2, kind: output, shape index: {}]
  %s3 = sld [smem:[#allocation0]]
  $region18: #{upsample_stack_forward.6} parent=0
    _
  %s5 = ssub.s32 1, %s3
  %s6 = scalar_select 0, %s5, %s3
  // Predicated region
  $region2: #{upsample_stack_forward.6} parent=0 // pred_check
    _
  $region3: #{upsample_stack_forward.6} parent=0 // pred_check_branch
    %8 = sbr.rel (0) target = $region5
  $region4: #{upsample_stack_forward.6} parent=0 // pred_region
    _
  $region5: #{upsample_stack_forward.6} parent=0 // pred_fallthru
    _
  // Predicated region
  $region6: #{upsample_stack_forward.6} parent=0 // pred_check
    _
  $region7: #{upsample_stack_forward.6} parent=0 // pred_check_branch
    %10 = sbr.rel (0) target = $region9
  $region8: #{upsample_stack_forward.6} parent=0 // pred_region
    _
  $region9: #{upsample_stack_forward.6} parent=0 // pred_fallthru
    _
  %v11 = vld [vmem:[%s0] sm:$0xff]
  %v12 = vld [vmem:[%s0 + $0x8] sm:$0xff]
  %v13 = vld [vmem:[%s0 + $0x10] sm:$0xff]
  %v14 = vld [vmem:[%s0 + $0x18] sm:$0xff]
  %v15 = vld [vmem:[%s0 + $0x20] sm:$0xff]
  %v16 = vld [vmem:[%s0 + $0x28] sm:$0xff]
  %v17 = vld [vmem:[%s0 + $0x30] sm:$0xff]
  %v18 = vld [vmem:[%s0 + $0x38] sm:$0xff]
  %v19 = vld [vmem:[%s0 + $0x40] sm:$0xff]
  %v20 = vld [vmem:[%s0 + $0x48] sm:$0xff]
  %v21 = vld [vmem:[%s0 + $0x50] sm:$0xff]
  %v22 = vld [vmem:[%s0 + $0x58] sm:$0xff]
  %v23 = vld [vmem:[%s0 + $0x60] sm:$0xff]
  %v24 = vld [vmem:[%s0 + $0x68] sm:$0xff]
  %v25 = vld [vmem:[%s0 + $0x70] sm:$0xff]
  %v26 = vld [vmem:[%s0 + $0x78] sm:$0xff]
  %v27 = vld [vmem:[%s0 + $0x80] sm:$0xff]
  %v28 = vld [vmem:[%s0 + $0x88] sm:$0xff]
  %v29 = vld [vmem:[%s0 + $0x90] sm:$0xff]
  %v30 = vld [vmem:[%s0 + $0x98] sm:$0xff]
  %v31 = vld [vmem:[%s0 + $0xa0] sm:$0xff]
  %v32 = vld [vmem:[%s0 + $0xa8] sm:$0xff]
  %v33 = vld [vmem:[%s0 + $0xb0] sm:$0xff]
  %v34 = vld [vmem:[%s0 + $0xb8] sm:$0xff]
  %v35 = vld [vmem:[%s0 + $0xc0] sm:$0xff]
  %v36 = vld [vmem:[%s0 + $0xc8] sm:$0xff]
  %v37 = vld [vmem:[%s0 + $0xd0] sm:$0xff]
  %v38 = vld [vmem:[%s0 + $0xd8] sm:$0xff]
  %v39 = vld [vmem:[%s0 + $0xe0] sm:$0xff]
  %v40 = vld [vmem:[%s0 + $0xe8] sm:$0xff]
  %v41 = vld [vmem:[%s0 + $0xf0] sm:$0xff]
  %v42 = vld [vmem:[%s0 + $0xf8] sm:$0xff]
  %v43 = vld [vmem:[%s0 + $0x100] sm:$0xff]
  %v44 = vld [vmem:[%s0 + $0x108] sm:$0xff]
  %v45 = vld [vmem:[%s0 + $0x110] sm:$0xff]
  %v46 = vld [vmem:[%s0 + $0x118] sm:$0xff]
  %v47 = vld [vmem:[%s0 + $0x120] sm:$0xff]
  %v48 = vld [vmem:[%s0 + $0x128] sm:$0xff]
  %v49 = vld [vmem:[%s0 + $0x130] sm:$0xff]
  %v50 = vld [vmem:[%s0 + $0x138] sm:$0xff]
  %v51 = vld [vmem:[%s0 + $0x140] sm:$0xff]
  %v52 = vld [vmem:[%s0 + $0x148] sm:$0xff]
  %v53 = vld [vmem:[%s0 + $0x150] sm:$0xff]
  %v54 = vld [vmem:[%s0 + $0x158] sm:$0xff]
  %v55 = vld [vmem:[%s0 + $0x160] sm:$0xff]
  %v56 = vld [vmem:[%s0 + $0x168] sm:$0xff]
  %v57 = vld [vmem:[%s0 + $0x170] sm:$0xff]
  %v58 = vld [vmem:[%s0 + $0x178] sm:$0xff]
  %v59 = vld [vmem:[%s0 + $0x180] sm:$0xff]
  %v60 = vld [vmem:[%s0 + $0x188] sm:$0xff]
  %v61 = vld [vmem:[%s0 + $0x190] sm:$0xff]
  %v62 = vld [vmem:[%s0 + $0x198] sm:$0xff]
  %v63 = vld [vmem:[%s0 + $0x1a0] sm:$0xff]
  %v64 = vld [vmem:[%s0 + $0x1a8] sm:$0xff]
  %v65 = vld [vmem:[%s0 + $0x1b0] sm:$0xff]
  %v66 = vld [vmem:[%s0 + $0x1b8] sm:$0xff]
  %v67 = vld [vmem:[%s0 + $0x1c0] sm:$0xff]
  %v68 = vld [vmem:[%s0 + $0x1c8] sm:$0xff]
  %v69 = vld [vmem:[%s0 + $0x1d0] sm:$0xff]
  %v70 = vld [vmem:[%s0 + $0x1d8] sm:$0xff]
  %v71 = vld [vmem:[%s0 + $0x1e0] sm:$0xff]
  %v72 = vld [vmem:[%s0 + $0x1e8] sm:$0xff]
  %v73 = vld [vmem:[%s0 + $0x1f0] sm:$0xff]
  %v74 = vld [vmem:[%s0 + $0x1f8] sm:$0xff]
  %v75 = vld [vmem:[%s1] sm:$0xff]
  %v76 = vld [vmem:[%s1 + $0x8] sm:$0xff]
  %v77 = vld [vmem:[%s1 + $0x10] sm:$0xff]
  %v78 = vld [vmem:[%s1 + $0x18] sm:$0xff]
  %vm79 = vcmask 261120
  %v81 = vsel %vm79, %v11, 0
  %v84 = vsel %vm79, %v12, 0
  %v87 = vsel %vm79, %v13, 0
  %v90 = vsel %vm79, %v14, 0
  %v93 = vsel %vm79, %v15, 0
  %v96 = vsel %vm79, %v16, 0
  %v99 = vsel %vm79, %v17, 0
  %v102 = vsel %vm79, %v18, 0
  %v105 = vsel %vm79, %v19, 0
  %v108 = vsel %vm79, %v20, 0
  %v111 = vsel %vm79, %v21, 0
  %v114 = vsel %vm79, %v22, 0
  %v117 = vsel %vm79, %v23, 0
  %v120 = vsel %vm79, %v24, 0
  %v123 = vsel %vm79, %v25, 0
  %v126 = vsel %vm79, %v26, 0
  %v129 = vsel %vm79, %v27, 0
  %v132 = vsel %vm79, %v28, 0
  %v135 = vsel %vm79, %v29, 0
  %v138 = vsel %vm79, %v30, 0
  %v141 = vsel %vm79, %v31, 0
  %v144 = vsel %vm79, %v32, 0
  %v147 = vsel %vm79, %v33, 0
  %v150 = vsel %vm79, %v34, 0
  %v153 = vsel %vm79, %v35, 0
  %v156 = vsel %vm79, %v36, 0
  %v159 = vsel %vm79, %v37, 0
  %v162 = vsel %vm79, %v38, 0
  %v165 = vsel %vm79, %v39, 0
  %v168 = vsel %vm79, %v40, 0
  %v171 = vsel %vm79, %v41, 0
  %v174 = vsel %vm79, %v42, 0
  %v177 = vsel %vm79, %v43, 0
  %v180 = vsel %vm79, %v44, 0
  %v183 = vsel %vm79, %v45, 0
  %v186 = vsel %vm79, %v46, 0
  %v189 = vsel %vm79, %v47, 0
  %v192 = vsel %vm79, %v48, 0
  %v195 = vsel %vm79, %v49, 0
  %v198 = vsel %vm79, %v50, 0
  %v201 = vsel %vm79, %v51, 0
  %v204 = vsel %vm79, %v52, 0
  %v207 = vsel %vm79, %v53, 0
  %v210 = vsel %vm79, %v54, 0
  %v213 = vsel %vm79, %v55, 0
  %v216 = vsel %vm79, %v56, 0
  %v219 = vsel %vm79, %v57, 0
  %v222 = vsel %vm79, %v58, 0
  %v225 = vsel %vm79, %v59, 0
  %v228 = vsel %vm79, %v60, 0
  %v231 = vsel %vm79, %v61, 0
  %v234 = vsel %vm79, %v62, 0
  %v237 = vsel %vm79, %v63, 0
  %v240 = vsel %vm79, %v64, 0
  %v243 = vsel %vm79, %v65, 0
  %v246 = vsel %vm79, %v66, 0
  %v249 = vsel %vm79, %v67, 0
  %v252 = vsel %vm79, %v68, 0
  %v255 = vsel %vm79, %v69, 0
  %v258 = vsel %vm79, %v70, 0
  %v261 = vsel %vm79, %v71, 0
  %v264 = vsel %vm79, %v72, 0
  %v267 = vsel %vm79, %v73, 0
  %v270 = vsel %vm79, %v74, 0
  %272 = vmatprep.subr.mxu0 0.0
  %273 = vmatpush1.msra.mxu0 %v75
  %274 = vmatprep.subr.mxu0 0.0
  %275 = vmatpush1.msra.mxu0 %v76
  %276 = vmatprep.subr.mxu0 0.0
  %277 = vmatpush1.msra.mxu0 %v77
  %278 = vmatprep.subr.mxu0 0.0
  %279 = vmatpush1.msra.mxu0 %v78
  %280 = vmatprep.subr.mxu0 0.0
  %281 = vmatpush1.msra.mxu0 0.0
  %282 = vmatprep.subr.mxu0 0.0
  %283 = vmatpush1.msra.mxu0 0.0
  %284 = vmatprep.subr.mxu0 0.0
  %285 = vmatpush1.msra.mxu0 0.0
  %286 = vmatprep.subr.mxu0 0.0
  %287 = vmatpush1.msra.mxu0 0.0
  %288 = vmatprep.subr.mxu0 0.0
  %289 = vmatpush1.msra.mxu0 0.0
  %290 = vmatprep.subr.mxu0 0.0
  %291 = vmatpush1.msra.mxu0 0.0
  %292 = vmatprep.subr.mxu0 0.0
  %293 = vmatpush1.msra.mxu0 0.0
  %294 = vmatprep.subr.mxu0 0.0
  %295 = vmatpush1.msra.mxu0 0.0
  %296 = vmatprep.subr.mxu0 0.0
  %297 = vmatpush1.msra.mxu0 0.0
  %298 = vmatprep.subr.mxu0 0.0
  %299 = vmatpush1.msra.mxu0 0.0
  %300 = vmatprep.subr.mxu0 0.0
  %301 = vmatpush1.msra.mxu0 0.0
  %302 = vmatprep.subr.mxu0 0.0
  %303 = vmatpush1.msra.mxu0 0.0
  %304 = vmatprep.subr.mxu0 0.0
  %305 = vmatpush1.msra.mxu0 0.0
  %306 = vmatprep.subr.mxu0 0.0
  %307 = vmatpush1.msra.mxu0 0.0
  %308 = vmatprep.subr.mxu0 0.0
  %309 = vmatpush1.msra.mxu0 0.0
  %310 = vmatprep.subr.mxu0 0.0
  %311 = vmatpush1.msra.mxu0 0.0
  %312 = vmatprep.subr.mxu0 0.0
  %313 = vmatpush1.msra.mxu0 0.0
  %314 = vmatprep.subr.mxu0 0.0
  %315 = vmatpush1.msra.mxu0 0.0
  %316 = vmatprep.subr.mxu0 0.0
  %317 = vmatpush1.msra.mxu0 0.0
  %318 = vmatprep.subr.mxu0 0.0
  %319 = vmatpush1.msra.mxu0 0.0
  %320 = vmatprep.subr.mxu0 0.0
  %321 = vmatpush1.msra.mxu0 0.0
  %322 = vmatprep.subr.mxu0 0.0
  %323 = vmatpush1.msra.mxu0 0.0
  %324 = vmatprep.subr.mxu0 0.0
  %325 = vmatpush1.msra.mxu0 0.0
  %326 = vmatprep.subr.mxu0 0.0
  %327 = vmatpush1.msra.mxu0 0.0
  %328 = vmatprep.subr.mxu0 0.0
  %329 = vmatpush1.msra.mxu0 0.0
  %330 = vmatprep.subr.mxu0 0.0
  %331 = vmatpush1.msra.mxu0 0.0
  %332 = vmatprep.subr.mxu0 0.0
  %333 = vmatpush1.msra.mxu0 0.0
  %334 = vmatprep.subr.mxu0 0.0
  %335 = vmatpush1.msra.mxu0 0.0
  %336 = vmatprep.mubr.f32.mxu0 0.0
  %337 = vmatmul.mubr.f32.gmra.mrb[0].mxu0 %v81
  %v338 = vpop.f32.mrb[0].mxu0
  %v339 = vadd.f32 0.0, %v338
  %v340 = vpop.f32.mrb[0].mxu0
  %341 = vmatprep.mubr.f32.mxu0 0.0
  %342 = vmatmul.mubr.f32.gmra.mrb[0].mxu0 %v84
  %v343 = vpop.f32.mrb[0].mxu0
  %v344 = vadd.f32 0.0, %v343
  %v345 = vpop.f32.mrb[0].mxu0
  %346 = vmatprep.mubr.f32.mxu0 0.0
  %347 = vmatmul.mubr.f32.gmra.mrb[0].mxu0 %v87
  %v348 = vpop.f32.mrb[0].mxu0
  %v349 = vadd.f32 0.0, %v348
  %v350 = vpop.f32.mrb[0].mxu0
  %351 = vmatprep.mubr.f32.mxu0 0.0
  %352 = vmatmul.mubr.f32.gmra.mrb[0].mxu0 %v90
  %v353 = vpop.f32.mrb[0].mxu0
  %v354 = vadd.f32 0.0, %v353
  %v355 = vpop.f32.mrb[0].mxu0
  %356 = vmatprep.mubr.f32.mxu0 0.0
  %357 = vmatmul.mubr.f32.gmra.mrb[0].mxu0 %v93
  %v358 = vpop.f32.mrb[0].mxu0
  %v359 = vadd.f32 0.0, %v358
  %v360 = vpop.f32.mrb[0].mxu0
  %361 = vmatprep.mubr.f32.mxu0 0.0
  %362 = vmatmul.mubr.f32.gmra.mrb[0].mxu0 %v96
  %v363 = vpop.f32.mrb[0].mxu0
  %v364 = vadd.f32 0.0, %v363
  %v365 = vpop.f32.mrb[0].mxu0
  %366 = vmatprep.mubr.f32.mxu0 0.0
  %367 = vmatmul.mubr.f32.gmra.mrb[0].mxu0 %v99
  %v368 = vpop.f32.mrb[0].mxu0
  %v369 = vadd.f32 0.0, %v368
  %v370 = vpop.f32.mrb[0].mxu0
  %371 = vmatprep.mubr.f32.mxu0 0.0
  %372 = vmatmul.mubr.f32.gmra.mrb[0].mxu0 %v102
  %v373 = vpop.f32.mrb[0].mxu0
  %v374 = vadd.f32 0.0, %v373
  %v375 = vpop.f32.mrb[0].mxu0
  %376 = vmatprep.mubr.f32.mxu0 0.0
  %377 = vmatmul.mubr.f32.gmra.mrb[0].mxu0 %v105
  %v378 = vpop.f32.mrb[0].mxu0
  %v379 = vadd.f32 0.0, %v378
  %v380 = vpop.f32.mrb[0].mxu0
  %381 = vmatprep.mubr.f32.mxu0 0.0
  %382 = vmatmul.mubr.f32.gmra.mrb[0].mxu0 %v108
  %v383 = vpop.f32.mrb[0].mxu0
  %v384 = vadd.f32 0.0, %v383
  %v385 = vpop.f32.mrb[0].mxu0
  %386 = vmatprep.mubr.f32.mxu0 0.0
  %387 = vmatmul.mubr.f32.gmra.mrb[0].mxu0 %v111
  %v388 = vpop.f32.mrb[0].mxu0
  %v389 = vadd.f32 0.0, %v388
  %v390 = vpop.f32.mrb[0].mxu0
  %391 = vmatprep.mubr.f32.mxu0 0.0
  %392 = vmatmul.mubr.f32.gmra.mrb[0].mxu0 %v114
  %v393 = vpop.f32.mrb[0].mxu0
  %v394 = vadd.f32 0.0, %v393
  %v395 = vpop.f32.mrb[0].mxu0
  %396 = vmatprep.mubr.f32.mxu0 0.0
  %397 = vmatmul.mubr.f32.gmra.mrb[0].mxu0 %v117
  %v398 = vpop.f32.mrb[0].mxu0
  %v399 = vadd.f32 0.0, %v398
  %v400 = vpop.f32.mrb[0].mxu0
  %401 = vmatprep.mubr.f32.mxu0 0.0
  %402 = vmatmul.mubr.f32.gmra.mrb[0].mxu0 %v120
  %v403 = vpop.f32.mrb[0].mxu0
  %v404 = vadd.f32 0.0, %v403
  %v405 = vpop.f32.mrb[0].mxu0
  %406 = vmatprep.mubr.f32.mxu0 0.0
  %407 = vmatmul.mubr.f32.gmra.mrb[0].mxu0 %v123
  %v408 = vpop.f32.mrb[0].mxu0
  %v409 = vadd.f32 0.0, %v408
  %v410 = vpop.f32.mrb[0].mxu0
  %411 = vmatprep.mubr.f32.mxu0 0.0
  %412 = vmatmul.mubr.f32.gmra.mrb[0].mxu0 %v126
  %v413 = vpop.f32.mrb[0].mxu0
  %v414 = vadd.f32 0.0, %v413
  %v415 = vpop.f32.mrb[0].mxu0
  %416 = vmatprep.mubr.f32.mxu0 0.0
  %417 = vmatmul.mubr.f32.gmra.mrb[0].mxu0 %v129
  %v418 = vpop.f32.mrb[0].mxu0
  %v419 = vadd.f32 0.0, %v418
  %v420 = vpop.f32.mrb[0].mxu0
  %421 = vmatprep.mubr.f32.mxu0 0.0
  %422 = vmatmul.mubr.f32.gmra.mrb[0].mxu0 %v132
  %v423 = vpop.f32.mrb[0].mxu0
  %v424 = vadd.f32 0.0, %v423
  %v425 = vpop.f32.mrb[0].mxu0
  %426 = vmatprep.mubr.f32.mxu0 0.0
  %427 = vmatmul.mubr.f32.gmra.mrb[0].mxu0 %v135
  %v428 = vpop.f32.mrb[0].mxu0
  %v429 = vadd.f32 0.0, %v428
  %v430 = vpop.f32.mrb[0].mxu0
  %431 = vmatprep.mubr.f32.mxu0 0.0
  %432 = vmatmul.mubr.f32.gmra.mrb[0].mxu0 %v138
  %v433 = vpop.f32.mrb[0].mxu0
  %v434 = vadd.f32 0.0, %v433
  %v435 = vpop.f32.mrb[0].mxu0
  %436 = vmatprep.mubr.f32.mxu0 0.0
  %437 = vmatmul.mubr.f32.gmra.mrb[0].mxu0 %v141
  %v438 = vpop.f32.mrb[0].mxu0
  %v439 = vadd.f32 0.0, %v438
  %v440 = vpop.f32.mrb[0].mxu0
  %441 = vmatprep.mubr.f32.mxu0 0.0
  %442 = vmatmul.mubr.f32.gmra.mrb[0].mxu0 %v144
  %v443 = vpop.f32.mrb[0].mxu0
  %v444 = vadd.f32 0.0, %v443
  %v445 = vpop.f32.mrb[0].mxu0
  %446 = vmatprep.mubr.f32.mxu0 0.0
  %447 = vmatmul.mubr.f32.gmra.mrb[0].mxu0 %v147
  %v448 = vpop.f32.mrb[0].mxu0
  %v449 = vadd.f32 0.0, %v448
  %v450 = vpop.f32.mrb[0].mxu0
  %451 = vmatprep.mubr.f32.mxu0 0.0
  %452 = vmatmul.mubr.f32.gmra.mrb[0].mxu0 %v150
  %v453 = vpop.f32.mrb[0].mxu0
  %v454 = vadd.f32 0.0, %v453
  %v455 = vpop.f32.mrb[0].mxu0
  %456 = vmatprep.mubr.f32.mxu0 0.0
  %457 = vmatmul.mubr.f32.gmra.mrb[0].mxu0 %v153
  %v458 = vpop.f32.mrb[0].mxu0
  %v459 = vadd.f32 0.0, %v458
  %v460 = vpop.f32.mrb[0].mxu0
  %461 = vmatprep.mubr.f32.mxu0 0.0
  %462 = vmatmul.mubr.f32.gmra.mrb[0].mxu0 %v156
  %v463 = vpop.f32.mrb[0].mxu0
  %v464 = vadd.f32 0.0, %v463
  %v465 = vpop.f32.mrb[0].mxu0
  %466 = vmatprep.mubr.f32.mxu0 0.0
  %467 = vmatmul.mubr.f32.gmra.mrb[0].mxu0 %v159
  %v468 = vpop.f32.mrb[0].mxu0
  %v469 = vadd.f32 0.0, %v468
  %v470 = vpop.f32.mrb[0].mxu0
  %471 = vmatprep.mubr.f32.mxu0 0.0
  %472 = vmatmul.mubr.f32.gmra.mrb[0].mxu0 %v162
  %v473 = vpop.f32.mrb[0].mxu0
  %v474 = vadd.f32 0.0, %v473
  %v475 = vpop.f32.mrb[0].mxu0
  %476 = vmatprep.mubr.f32.mxu0 0.0
  %477 = vmatmul.mubr.f32.gmra.mrb[0].mxu0 %v165
  %v478 = vpop.f32.mrb[0].mxu0
  %v479 = vadd.f32 0.0, %v478
  %v480 = vpop.f32.mrb[0].mxu0
  %481 = vmatprep.mubr.f32.mxu0 0.0
  %482 = vmatmul.mubr.f32.gmra.mrb[0].mxu0 %v168
  %v483 = vpop.f32.mrb[0].mxu0
  %v484 = vadd.f32 0.0, %v483
  %v485 = vpop.f32.mrb[0].mxu0
  %486 = vmatprep.mubr.f32.mxu0 0.0
  %487 = vmatmul.mubr.f32.gmra.mrb[0].mxu0 %v171
  %v488 = vpop.f32.mrb[0].mxu0
  %v489 = vadd.f32 0.0, %v488
  %v490 = vpop.f32.mrb[0].mxu0
  %491 = vmatprep.mubr.f32.mxu0 0.0
  %492 = vmatmul.mubr.f32.gmra.mrb[0].mxu0 %v174
  %v493 = vpop.f32.mrb[0].mxu0
  %v494 = vadd.f32 0.0, %v493
  %v495 = vpop.f32.mrb[0].mxu0
  %496 = vmatprep.mubr.f32.mxu0 0.0
  %497 = vmatmul.mubr.f32.gmra.mrb[0].mxu0 %v177
  %v498 = vpop.f32.mrb[0].mxu0
  %v499 = vadd.f32 0.0, %v498
  %v500 = vpop.f32.mrb[0].mxu0
  %501 = vmatprep.mubr.f32.mxu0 0.0
  %502 = vmatmul.mubr.f32.gmra.mrb[0].mxu0 %v180
  %v503 = vpop.f32.mrb[0].mxu0
  %v504 = vadd.f32 0.0, %v503
  %v505 = vpop.f32.mrb[0].mxu0
  %506 = vmatprep.mubr.f32.mxu0 0.0
  %507 = vmatmul.mubr.f32.gmra.mrb[0].mxu0 %v183
  %v508 = vpop.f32.mrb[0].mxu0
  %v509 = vadd.f32 0.0, %v508
  %v510 = vpop.f32.mrb[0].mxu0
  %511 = vmatprep.mubr.f32.mxu0 0.0
  %512 = vmatmul.mubr.f32.gmra.mrb[0].mxu0 %v186
  %v513 = vpop.f32.mrb[0].mxu0
  %v514 = vadd.f32 0.0, %v513
  %v515 = vpop.f32.mrb[0].mxu0
  %516 = vmatprep.mubr.f32.mxu0 0.0
  %517 = vmatmul.mubr.f32.gmra.mrb[0].mxu0 %v189
  %v518 = vpop.f32.mrb[0].mxu0
  %v519 = vadd.f32 0.0, %v518
  %v520 = vpop.f32.mrb[0].mxu0
  %521 = vmatprep.mubr.f32.mxu0 0.0
  %522 = vmatmul.mubr.f32.gmra.mrb[0].mxu0 %v192
  %v523 = vpop.f32.mrb[0].mxu0
  %v524 = vadd.f32 0.0, %v523
  %v525 = vpop.f32.mrb[0].mxu0
  %526 = vmatprep.mubr.f32.mxu0 0.0
  %527 = vmatmul.mubr.f32.gmra.mrb[0].mxu0 %v195
  %v528 = vpop.f32.mrb[0].mxu0
  %v529 = vadd.f32 0.0, %v528
  %v530 = vpop.f32.mrb[0].mxu0
  %531 = vmatprep.mubr.f32.mxu0 0.0
  %532 = vmatmul.mubr.f32.gmra.mrb[0].mxu0 %v198
  %v533 = vpop.f32.mrb[0].mxu0
  %v534 = vadd.f32 0.0, %v533
  %v535 = vpop.f32.mrb[0].mxu0
  %536 = vmatprep.mubr.f32.mxu0 0.0
  %537 = vmatmul.mubr.f32.gmra.mrb[0].mxu0 %v201
  %v538 = vpop.f32.mrb[0].mxu0
  %v539 = vadd.f32 0.0, %v538
  %v540 = vpop.f32.mrb[0].mxu0
  %541 = vmatprep.mubr.f32.mxu0 0.0
  %542 = vmatmul.mubr.f32.gmra.mrb[0].mxu0 %v204
  %v543 = vpop.f32.mrb[0].mxu0
  %v544 = vadd.f32 0.0, %v543
  %v545 = vpop.f32.mrb[0].mxu0
  %546 = vmatprep.mubr.f32.mxu0 0.0
  %547 = vmatmul.mubr.f32.gmra.mrb[0].mxu0 %v207
  %v548 = vpop.f32.mrb[0].mxu0
  %v549 = vadd.f32 0.0, %v548
  %v550 = vpop.f32.mrb[0].mxu0
  %551 = vmatprep.mubr.f32.mxu0 0.0
  %552 = vmatmul.mubr.f32.gmra.mrb[0].mxu0 %v210
  %v553 = vpop.f32.mrb[0].mxu0
  %v554 = vadd.f32 0.0, %v553
  %v555 = vpop.f32.mrb[0].mxu0
  %556 = vmatprep.mubr.f32.mxu0 0.0
  %557 = vmatmul.mubr.f32.gmra.mrb[0].mxu0 %v213
  %v558 = vpop.f32.mrb[0].mxu0
  %v559 = vadd.f32 0.0, %v558
  %v560 = vpop.f32.mrb[0].mxu0
  %561 = vmatprep.mubr.f32.mxu0 0.0
  %562 = vmatmul.mubr.f32.gmra.mrb[0].mxu0 %v216
  %v563 = vpop.f32.mrb[0].mxu0
  %v564 = vadd.f32 0.0, %v563
  %v565 = vpop.f32.mrb[0].mxu0
  %566 = vmatprep.mubr.f32.mxu0 0.0
  %567 = vmatmul.mubr.f32.gmra.mrb[0].mxu0 %v219
  %v568 = vpop.f32.mrb[0].mxu0
  %v569 = vadd.f32 0.0, %v568
  %v570 = vpop.f32.mrb[0].mxu0
  %571 = vmatprep.mubr.f32.mxu0 0.0
  %572 = vmatmul.mubr.f32.gmra.mrb[0].mxu0 %v222
  %v573 = vpop.f32.mrb[0].mxu0
  %v574 = vadd.f32 0.0, %v573
  %v575 = vpop.f32.mrb[0].mxu0
  %576 = vmatprep.mubr.f32.mxu0 0.0
  %577 = vmatmul.mubr.f32.gmra.mrb[0].mxu0 %v225
  %v578 = vpop.f32.mrb[0].mxu0
  %v579 = vadd.f32 0.0, %v578
  %v580 = vpop.f32.mrb[0].mxu0
  %581 = vmatprep.mubr.f32.mxu0 0.0
  %582 = vmatmul.mubr.f32.gmra.mrb[0].mxu0 %v228
  %v583 = vpop.f32.mrb[0].mxu0
  %v584 = vadd.f32 0.0, %v583
  %v585 = vpop.f32.mrb[0].mxu0
  %586 = vmatprep.mubr.f32.mxu0 0.0
  %587 = vmatmul.mubr.f32.gmra.mrb[0].mxu0 %v231
  %v588 = vpop.f32.mrb[0].mxu0
  %v589 = vadd.f32 0.0, %v588
  %v590 = vpop.f32.mrb[0].mxu0
  %591 = vmatprep.mubr.f32.mxu0 0.0
  %592 = vmatmul.mubr.f32.gmra.mrb[0].mxu0 %v234
  %v593 = vpop.f32.mrb[0].mxu0
  %v594 = vadd.f32 0.0, %v593
  %v595 = vpop.f32.mrb[0].mxu0
  %596 = vmatprep.mubr.f32.mxu0 0.0
  %597 = vmatmul.mubr.f32.gmra.mrb[0].mxu0 %v237
  %v598 = vpop.f32.mrb[0].mxu0
  %v599 = vadd.f32 0.0, %v598
  %v600 = vpop.f32.mrb[0].mxu0
  %601 = vmatprep.mubr.f32.mxu0 0.0
  %602 = vmatmul.mubr.f32.gmra.mrb[0].mxu0 %v240
  %v603 = vpop.f32.mrb[0].mxu0
  %v604 = vadd.f32 0.0, %v603
  %v605 = vpop.f32.mrb[0].mxu0
  %606 = vmatprep.mubr.f32.mxu0 0.0
  %607 = vmatmul.mubr.f32.gmra.mrb[0].mxu0 %v243
  %v608 = vpop.f32.mrb[0].mxu0
  %v609 = vadd.f32 0.0, %v608
  %v610 = vpop.f32.mrb[0].mxu0
  %611 = vmatprep.mubr.f32.mxu0 0.0
  %612 = vmatmul.mubr.f32.gmra.mrb[0].mxu0 %v246
  %v613 = vpop.f32.mrb[0].mxu0
  %v614 = vadd.f32 0.0, %v613
  %v615 = vpop.f32.mrb[0].mxu0
  %616 = vmatprep.mubr.f32.mxu0 0.0
  %617 = vmatmul.mubr.f32.gmra.mrb[0].mxu0 %v249
  %v618 = vpop.f32.mrb[0].mxu0
  %v619 = vadd.f32 0.0, %v618
  %v620 = vpop.f32.mrb[0].mxu0
  %621 = vmatprep.mubr.f32.mxu0 0.0
  %622 = vmatmul.mubr.f32.gmra.mrb[0].mxu0 %v252
  %v623 = vpop.f32.mrb[0].mxu0
  %v624 = vadd.f32 0.0, %v623
  %v625 = vpop.f32.mrb[0].mxu0
  %626 = vmatprep.mubr.f32.mxu0 0.0
  %627 = vmatmul.mubr.f32.gmra.mrb[0].mxu0 %v255
  %v628 = vpop.f32.mrb[0].mxu0
  %v629 = vadd.f32 0.0, %v628
  %v630 = vpop.f32.mrb[0].mxu0
  %631 = vmatprep.mubr.f32.mxu0 0.0
  %632 = vmatmul.mubr.f32.gmra.mrb[0].mxu0 %v258
  %v633 = vpop.f32.mrb[0].mxu0
  %v634 = vadd.f32 0.0, %v633
  %v635 = vpop.f32.mrb[0].mxu0
  %636 = vmatprep.mubr.f32.mxu0 0.0
  %637 = vmatmul.mubr.f32.gmra.mrb[0].mxu0 %v261
  %v638 = vpop.f32.mrb[0].mxu0
  %v639 = vadd.f32 0.0, %v638
  %v640 = vpop.f32.mrb[0].mxu0
  %641 = vmatprep.mubr.f32.mxu0 0.0
  %642 = vmatmul.mubr.f32.gmra.mrb[0].mxu0 %v264
  %v643 = vpop.f32.mrb[0].mxu0
  %v644 = vadd.f32 0.0, %v643
  %v645 = vpop.f32.mrb[0].mxu0
  %646 = vmatprep.mubr.f32.mxu0 0.0
  %647 = vmatmul.mubr.f32.gmra.mrb[0].mxu0 %v267
  %v648 = vpop.f32.mrb[0].mxu0
  %v649 = vadd.f32 0.0, %v648
  %v650 = vpop.f32.mrb[0].mxu0
  %651 = vmatprep.mubr.f32.mxu0 0.0
  %652 = vmatmul.mubr.f32.gmra.mrb[0].mxu0 %v270
  %v653 = vpop.f32.mrb[0].mxu0
  %v654 = vadd.f32 0.0, %v653
  %v655 = vpop.f32.mrb[0].mxu0
  %656 = vdwg.mxu0
  %v657 = vadd.f32 %v339, %v344
  %v658 = vadd.f32 %v657, %v349
  %v659 = vadd.f32 %v658, %v354
  %v660 = vadd.f32 %v659, %v359
  %v661 = vadd.f32 %v660, %v364
  %v662 = vadd.f32 %v661, %v369
  %v663 = vadd.f32 %v662, %v374
  %v664 = vadd.f32 %v663, %v379
  %v665 = vadd.f32 %v664, %v384
  %v666 = vadd.f32 %v665, %v389
  %v667 = vadd.f32 %v666, %v394
  %v668 = vadd.f32 %v667, %v399
  %v669 = vadd.f32 %v668, %v404
  %v670 = vadd.f32 %v669, %v409
  %v671 = vadd.f32 %v670, %v414
  %v672 = vadd.f32 %v671, %v419
  %v673 = vadd.f32 %v672, %v424
  %v674 = vadd.f32 %v673, %v429
  %v675 = vadd.f32 %v674, %v434
  %v676 = vadd.f32 %v675, %v439
  %v677 = vadd.f32 %v676, %v444
  %v678 = vadd.f32 %v677, %v449
  %v679 = vadd.f32 %v678, %v454
  %v680 = vadd.f32 %v679, %v459
  %v681 = vadd.f32 %v680, %v464
  %v682 = vadd.f32 %v681, %v469
  %v683 = vadd.f32 %v682, %v474
  %v684 = vadd.f32 %v683, %v479
  %v685 = vadd.f32 %v684, %v484
  %v686 = vadd.f32 %v685, %v489
  %v687 = vadd.f32 %v686, %v494
  %v688 = vadd.f32 %v687, %v499
  %v689 = vadd.f32 %v688, %v504
  %v690 = vadd.f32 %v689, %v509
  %v691 = vadd.f32 %v690, %v514
  %v692 = vadd.f32 %v691, %v519
  %v693 = vadd.f32 %v692, %v524
  %v694 = vadd.f32 %v693, %v529
  %v695 = vadd.f32 %v694, %v534
  %v696 = vadd.f32 %v695, %v539
  %v697 = vadd.f32 %v696, %v544
  %v698 = vadd.f32 %v697, %v549
  %v699 = vadd.f32 %v698, %v554
  %v700 = vadd.f32 %v699, %v559
  %v701 = vadd.f32 %v700, %v564
  %v702 = vadd.f32 %v701, %v569
  %v703 = vadd.f32 %v702, %v574
  %v704 = vadd.f32 %v703, %v579
  %v705 = vadd.f32 %v704, %v584
  %v706 = vadd.f32 %v705, %v589
  %v707 = vadd.f32 %v706, %v594
  %v708 = vadd.f32 %v707, %v599
  %v709 = vadd.f32 %v708, %v604
  %v710 = vadd.f32 %v709, %v609
  %v711 = vadd.f32 %v710, %v614
  %v712 = vadd.f32 %v711, %v619
  %v713 = vadd.f32 %v712, %v624
  %v714 = vadd.f32 %v713, %v629
  %v715 = vadd.f32 %v714, %v634
  %v716 = vadd.f32 %v715, %v639
  %v717 = vadd.f32 %v716, %v644
  %v718 = vadd.f32 %v717, %v649
  %v719 = vadd.f32 %v718, %v654
  %v720 = vrot.slane %v719, 4
  %v721 = vadd.f32 %v719, %v720
  %v722 = vrot.slane %v721, 2
  %v723 = vadd.f32 %v721, %v722
  %v724 = vrot.slane %v723, 1
  %v725 = vadd.f32 %v723, %v724
  %726 = vst [vmem:[%s2] sm:$0x1] %v725
  %v727 = vmul.f32 %v339, %v339
  %v728 = vmul.f32 %v344, %v344
  %v729 = vmul.f32 %v349, %v349
  %v730 = vmul.f32 %v354, %v354
  %v731 = vmul.f32 %v359, %v359
  %v732 = vmul.f32 %v364, %v364
  %v733 = vmul.f32 %v369, %v369
  %v734 = vmul.f32 %v374, %v374
  %v735 = vmul.f32 %v379, %v379
  %v736 = vmul.f32 %v384, %v384
  %v737 = vmul.f32 %v389, %v389
  %v738 = vmul.f32 %v394, %v394
  %v739 = vmul.f32 %v399, %v399
  %v740 = vmul.f32 %v404, %v404
  %v741 = vmul.f32 %v409, %v409
  %v742 = vmul.f32 %v414, %v414
  %v743 = vmul.f32 %v419, %v419
  %v744 = vmul.f32 %v424, %v424
  %v745 = vmul.f32 %v429, %v429
  %v746 = vmul.f32 %v434, %v434
  %v747 = vmul.f32 %v439, %v439
  %v748 = vmul.f32 %v444, %v444
  %v749 = vmul.f32 %v449, %v449
  %v750 = vmul.f32 %v454, %v454
  %v751 = vmul.f32 %v459, %v459
  %v752 = vmul.f32 %v464, %v464
  %v753 = vmul.f32 %v469, %v469
  %v754 = vmul.f32 %v474, %v474
  %v755 = vmul.f32 %v479, %v479
  %v756 = vmul.f32 %v484, %v484
  %v757 = vmul.f32 %v489, %v489
  %v758 = vmul.f32 %v494, %v494
  %v759 = vmul.f32 %v499, %v499
  %v760 = vmul.f32 %v504, %v504
  %v761 = vmul.f32 %v509, %v509
  %v762 = vmul.f32 %v514, %v514
  %v763 = vmul.f32 %v519, %v519
  %v764 = vmul.f32 %v524, %v524
  %v765 = vmul.f32 %v529, %v529
  %v766 = vmul.f32 %v534, %v534
  %v767 = vmul.f32 %v539, %v539
  %v768 = vmul.f32 %v544, %v544
  %v769 = vmul.f32 %v549, %v549
  %v770 = vmul.f32 %v554, %v554
  %v771 = vmul.f32 %v559, %v559
  %v772 = vmul.f32 %v564, %v564
  %v773 = vmul.f32 %v569, %v569
  %v774 = vmul.f32 %v574, %v574
  %v775 = vmul.f32 %v579, %v579
  %v776 = vmul.f32 %v584, %v584
  %v777 = vmul.f32 %v589, %v589
  %v778 = vmul.f32 %v594, %v594
  %v779 = vmul.f32 %v599, %v599
  %v780 = vmul.f32 %v604, %v604
  %v781 = vmul.f32 %v609, %v609
  %v782 = vmul.f32 %v614, %v614
  %v783 = vmul.f32 %v619, %v619
  %v784 = vmul.f32 %v624, %v624
  %v785 = vmul.f32 %v629, %v629
  %v786 = vmul.f32 %v634, %v634
  %v787 = vmul.f32 %v639, %v639
  %v788 = vmul.f32 %v644, %v644
  %v789 = vmul.f32 %v649, %v649
  %v790 = vmul.f32 %v654, %v654
  %v791 = vadd.f32 %v727, %v728
  %v792 = vadd.f32 %v791, %v729
  %v793 = vadd.f32 %v792, %v730
  %v794 = vadd.f32 %v793, %v731
  %v795 = vadd.f32 %v794, %v732
  %v796 = vadd.f32 %v795, %v733
  %v797 = vadd.f32 %v796, %v734
  %v798 = vadd.f32 %v797, %v735
  %v799 = vadd.f32 %v798, %v736
  %v800 = vadd.f32 %v799, %v737
  %v801 = vadd.f32 %v800, %v738
  %v802 = vadd.f32 %v801, %v739
  %v803 = vadd.f32 %v802, %v740
  %v804 = vadd.f32 %v803, %v741
  %v805 = vadd.f32 %v804, %v742
  %v806 = vadd.f32 %v805, %v743
  %v807 = vadd.f32 %v806, %v744
  %v808 = vadd.f32 %v807, %v745
  %v809 = vadd.f32 %v808, %v746
  %v810 = vadd.f32 %v809, %v747
  %v811 = vadd.f32 %v810, %v748
  %v812 = vadd.f32 %v811, %v749
  %v813 = vadd.f32 %v812, %v750
  %v814 = vadd.f32 %v813, %v751
  %v815 = vadd.f32 %v814, %v752
  %v816 = vadd.f32 %v815, %v753
  %v817 = vadd.f32 %v816, %v754
  %v818 = vadd.f32 %v817, %v755
  %v819 = vadd.f32 %v818, %v756
  %v820 = vadd.f32 %v819, %v757
  %v821 = vadd.f32 %v820, %v758
  %v822 = vadd.f32 %v821, %v759
  %v823 = vadd.f32 %v822, %v760
  %v824 = vadd.f32 %v823, %v761
  %v825 = vadd.f32 %v824, %v762
  %v826 = vadd.f32 %v825, %v763
  %v827 = vadd.f32 %v826, %v764
  %v828 = vadd.f32 %v827, %v765
  %v829 = vadd.f32 %v828, %v766
  %v830 = vadd.f32 %v829, %v767
  %v831 = vadd.f32 %v830, %v768
  %v832 = vadd.f32 %v831, %v769
  %v833 = vadd.f32 %v832, %v770
  %v834 = vadd.f32 %v833, %v771
  %v835 = vadd.f32 %v834, %v772
  %v836 = vadd.f32 %v835, %v773
  %v837 = vadd.f32 %v836, %v774
  %v838 = vadd.f32 %v837, %v775
  %v839 = vadd.f32 %v838, %v776
  %v840 = vadd.f32 %v839, %v777
  %v841 = vadd.f32 %v840, %v778
  %v842 = vadd.f32 %v841, %v779
  %v843 = vadd.f32 %v842, %v780
  %v844 = vadd.f32 %v843, %v781
  %v845 = vadd.f32 %v844, %v782
  %v846 = vadd.f32 %v845, %v783
  %v847 = vadd.f32 %v846, %v784
  %v848 = vadd.f32 %v847, %v785
  %v849 = vadd.f32 %v848, %v786
  %v850 = vadd.f32 %v849, %v787
  %v851 = vadd.f32 %v850, %v788
  %v852 = vadd.f32 %v851, %v789
  %v853 = vadd.f32 %v852, %v790
  %v854 = vrot.slane %v853, 4
  %v855 = vadd.f32 %v853, %v854
  %v856 = vrot.slane %v855, 2
  %v857 = vadd.f32 %v855, %v856
  %v858 = vrot.slane %v857, 1
  %v859 = vadd.f32 %v857, %v858
  %860 = vst [vmem:[%s2 + $0x1] sm:$0x1] %v859
  // Predicated region
  $region10: #{upsample_stack_forward.6} parent=0 // pred_check
    _
  $region11: #{upsample_stack_forward.6} parent=0 // pred_check_branch
    %862 = sbr.rel (0) target = $region13
  $region12: #{upsample_stack_forward.6} parent=0 // pred_region
    _
  $region13: #{upsample_stack_forward.6} parent=0 // pred_fallthru
    _
  // Predicated region
  $region14: #{upsample_stack_forward.6} parent=0 // pred_check
    _
  $region15: #{upsample_stack_forward.6} parent=0 // pred_check_branch
    %864 = sbr.rel (0) target = $region17
  $region16: #{upsample_stack_forward.6} parent=0 // pred_region
    _
  $region17: #{upsample_stack_forward.6} parent=0 // pred_fallthru
    _

// kernel: upsample_stack_forward.7
$region0: #{upsample_stack_forward.7}
  #allocation0 [shape = 'u32[]', space=smem, size = 0x4, offset = 0x4, fixed_abs, tag = 'smem constant byte address 0x4 - core index']
  #allocation1 [shape = 'u32[144,128]{1,0:T(1,128)}', space=vmem, size = 0x12000, scoped, tag = 'internal scratch']
  %s0 = inlined_call_operand.vmem [shape: f32[512,32], index: 0, kind: input, shape index: {}]
  %s1 = inlined_call_operand.vmem [shape: f32[32,128], index: 1, kind: input, shape index: {}]
  %s2 = inlined_call_operand.vmem [shape: f32[1,128], index: 2, kind: input, shape index: {}]
  %s3 = inlined_call_operand.vmem [shape: f32[1,128], index: 3, kind: input, shape index: {}]
  %s4 = inlined_call_operand.vmem [shape: f32[512,128], index: 4, kind: output, shape index: {}]
  %s5 = sld [smem:[#allocation0]]
  $region26: #{upsample_stack_forward.7} parent=0
    _
  %s7 = ssub.s32 1, %s5
  %s8 = scalar_select 0, %s7, %s5
  // Predicated region
  $region2: #{upsample_stack_forward.7} parent=0 // pred_check
    _
  $region3: #{upsample_stack_forward.7} parent=0 // pred_check_branch
    %10 = sbr.rel (0) target = $region5
  $region4: #{upsample_stack_forward.7} parent=0 // pred_region
    _
  $region5: #{upsample_stack_forward.7} parent=0 // pred_fallthru
    _
  // Predicated region
  $region6: #{upsample_stack_forward.7} parent=0 // pred_check
    _
  $region7: #{upsample_stack_forward.7} parent=0 // pred_check_branch
    %12 = sbr.rel (0) target = $region9
  $region8: #{upsample_stack_forward.7} parent=0 // pred_region
    _
  $region9: #{upsample_stack_forward.7} parent=0 // pred_fallthru
    _
  // Predicated region
  $region10: #{upsample_stack_forward.7} parent=0 // pred_check
    _
  $region11: #{upsample_stack_forward.7} parent=0 // pred_check_branch
    %14 = sbr.rel (0) target = $region13
  $region12: #{upsample_stack_forward.7} parent=0 // pred_region
    _
  $region13: #{upsample_stack_forward.7} parent=0 // pred_fallthru
    _
  // Predicated region
  $region14: #{upsample_stack_forward.7} parent=0 // pred_check
    _
  $region15: #{upsample_stack_forward.7} parent=0 // pred_check_branch
    %16 = sbr.rel (0) target = $region17
  $region16: #{upsample_stack_forward.7} parent=0 // pred_region
    _
  $region17: #{upsample_stack_forward.7} parent=0 // pred_fallthru
    _
  %v17 = vld [vmem:[%s0] sm:$0xff]
  %v18 = vld [vmem:[%s0 + $0x8] sm:$0xff]
  %v19 = vld [vmem:[%s0 + $0x10] sm:$0xff]
  %v20 = vld [vmem:[%s0 + $0x18] sm:$0xff]
  %v21 = vld [vmem:[%s0 + $0x20] sm:$0xff]
  %v22 = vld [vmem:[%s0 + $0x28] sm:$0xff]
  %v23 = vld [vmem:[%s0 + $0x30] sm:$0xff]
  %v24 = vld [vmem:[%s0 + $0x38] sm:$0xff]
  %v25 = vld [vmem:[%s0 + $0x40] sm:$0xff]
  %v26 = vld [vmem:[%s0 + $0x48] sm:$0xff]
  %v27 = vld [vmem:[%s0 + $0x50] sm:$0xff]
  %v28 = vld [vmem:[%s0 + $0x58] sm:$0xff]
  %v29 = vld [vmem:[%s0 + $0x60] sm:$0xff]
  %v30 = vld [vmem:[%s0 + $0x68] sm:$0xff]
  %v31 = vld [vmem:[%s0 + $0x70] sm:$0xff]
  %v32 = vld [vmem:[%s0 + $0x78] sm:$0xff]
  %v33 = vld [vmem:[%s0 + $0x80] sm:$0xff]
  %v34 = vld [vmem:[%s0 + $0x88] sm:$0xff]
  %v35 = vld [vmem:[%s0 + $0x90] sm:$0xff]
  %v36 = vld [vmem:[%s0 + $0x98] sm:$0xff]
  %v37 = vld [vmem:[%s0 + $0xa0] sm:$0xff]
  %v38 = vld [vmem:[%s0 + $0xa8] sm:$0xff]
  %v39 = vld [vmem:[%s0 + $0xb0] sm:$0xff]
  %v40 = vld [vmem:[%s0 + $0xb8] sm:$0xff]
  %v41 = vld [vmem:[%s0 + $0xc0] sm:$0xff]
  %v42 = vld [vmem:[%s0 + $0xc8] sm:$0xff]
  %v43 = vld [vmem:[%s0 + $0xd0] sm:$0xff]
  %v44 = vld [vmem:[%s0 + $0xd8] sm:$0xff]
  %v45 = vld [vmem:[%s0 + $0xe0] sm:$0xff]
  %v46 = vld [vmem:[%s0 + $0xe8] sm:$0xff]
  %v47 = vld [vmem:[%s0 + $0xf0] sm:$0xff]
  %v48 = vld [vmem:[%s0 + $0xf8] sm:$0xff]
  %v49 = vld [vmem:[%s0 + $0x100] sm:$0xff]
  %v50 = vld [vmem:[%s0 + $0x108] sm:$0xff]
  %v51 = vld [vmem:[%s0 + $0x110] sm:$0xff]
  %v52 = vld [vmem:[%s0 + $0x118] sm:$0xff]
  %v53 = vld [vmem:[%s0 + $0x120] sm:$0xff]
  %v54 = vld [vmem:[%s0 + $0x128] sm:$0xff]
  %v55 = vld [vmem:[%s0 + $0x130] sm:$0xff]
  %v56 = vld [vmem:[%s0 + $0x138] sm:$0xff]
  %v57 = vld [vmem:[%s0 + $0x140] sm:$0xff]
  %v58 = vld [vmem:[%s0 + $0x148] sm:$0xff]
  %v59 = vld [vmem:[%s0 + $0x150] sm:$0xff]
  %v60 = vld [vmem:[%s0 + $0x158] sm:$0xff]
  %v61 = vld [vmem:[%s0 + $0x160] sm:$0xff]
  %v62 = vld [vmem:[%s0 + $0x168] sm:$0xff]
  %v63 = vld [vmem:[%s0 + $0x170] sm:$0xff]
  %v64 = vld [vmem:[%s0 + $0x178] sm:$0xff]
  %v65 = vld [vmem:[%s0 + $0x180] sm:$0xff]
  %v66 = vld [vmem:[%s0 + $0x188] sm:$0xff]
  %v67 = vld [vmem:[%s0 + $0x190] sm:$0xff]
  %v68 = vld [vmem:[%s0 + $0x198] sm:$0xff]
  %v69 = vld [vmem:[%s0 + $0x1a0] sm:$0xff]
  %v70 = vld [vmem:[%s0 + $0x1a8] sm:$0xff]
  %v71 = vld [vmem:[%s0 + $0x1b0] sm:$0xff]
  %v72 = vld [vmem:[%s0 + $0x1b8] sm:$0xff]
  %v73 = vld [vmem:[%s0 + $0x1c0] sm:$0xff]
  %v74 = vld [vmem:[%s0 + $0x1c8] sm:$0xff]
  %v75 = vld [vmem:[%s0 + $0x1d0] sm:$0xff]
  %v76 = vld [vmem:[%s0 + $0x1d8] sm:$0xff]
  %v77 = vld [vmem:[%s0 + $0x1e0] sm:$0xff]
  %v78 = vld [vmem:[%s0 + $0x1e8] sm:$0xff]
  %v79 = vld [vmem:[%s0 + $0x1f0] sm:$0xff]
  %v80 = vld [vmem:[%s0 + $0x1f8] sm:$0xff]
  %v81 = vld [vmem:[%s1] sm:$0xff]
  %v82 = vld [vmem:[%s1 + $0x8] sm:$0xff]
  %v83 = vld [vmem:[%s1 + $0x10] sm:$0xff]
  %v84 = vld [vmem:[%s1 + $0x18] sm:$0xff]
  %vm85 = vcmask 261120
  %v87 = vsel %vm85, %v17, 0
  %v90 = vsel %vm85, %v18, 0
  %v93 = vsel %vm85, %v19, 0
  %v96 = vsel %vm85, %v20, 0
  %v99 = vsel %vm85, %v21, 0
  %v102 = vsel %vm85, %v22, 0
  %v105 = vsel %vm85, %v23, 0
  %v108 = vsel %vm85, %v24, 0
  %v111 = vsel %vm85, %v25, 0
  %v114 = vsel %vm85, %v26, 0
  %v117 = vsel %vm85, %v27, 0
  %v120 = vsel %vm85, %v28, 0
  %v123 = vsel %vm85, %v29, 0
  %v126 = vsel %vm85, %v30, 0
  %v129 = vsel %vm85, %v31, 0
  %v132 = vsel %vm85, %v32, 0
  %v135 = vsel %vm85, %v33, 0
  %v138 = vsel %vm85, %v34, 0
  %v141 = vsel %vm85, %v35, 0
  %v144 = vsel %vm85, %v36, 0
  %v147 = vsel %vm85, %v37, 0
  %v150 = vsel %vm85, %v38, 0
  %v153 = vsel %vm85, %v39, 0
  %v156 = vsel %vm85, %v40, 0
  %v159 = vsel %vm85, %v41, 0
  %v162 = vsel %vm85, %v42, 0
  %v165 = vsel %vm85, %v43, 0
  %v168 = vsel %vm85, %v44, 0
  %v171 = vsel %vm85, %v45, 0
  %v174 = vsel %vm85, %v46, 0
  %v177 = vsel %vm85, %v47, 0
  %v180 = vsel %vm85, %v48, 0
  %v183 = vsel %vm85, %v49, 0
  %v186 = vsel %vm85, %v50, 0
  %v189 = vsel %vm85, %v51, 0
  %v192 = vsel %vm85, %v52, 0
  %v195 = vsel %vm85, %v53, 0
  %v198 = vsel %vm85, %v54, 0
  %v201 = vsel %vm85, %v55, 0
  %v204 = vsel %vm85, %v56, 0
  %v207 = vsel %vm85, %v57, 0
  %v210 = vsel %vm85, %v58, 0
  %v213 = vsel %vm85, %v59, 0
  %v216 = vsel %vm85, %v60, 0
  %v219 = vsel %vm85, %v61, 0
  %v222 = vsel %vm85, %v62, 0
  %v225 = vsel %vm85, %v63, 0
  %v228 = vsel %vm85, %v64, 0
  %v231 = vsel %vm85, %v65, 0
  %v234 = vsel %vm85, %v66, 0
  %v237 = vsel %vm85, %v67, 0
  %v240 = vsel %vm85, %v68, 0
  %v243 = vsel %vm85, %v69, 0
  %v246 = vsel %vm85, %v70, 0
  %v249 = vsel %vm85, %v71, 0
  %v252 = vsel %vm85, %v72, 0
  %v255 = vsel %vm85, %v73, 0
  %v258 = vsel %vm85, %v74, 0
  %v261 = vsel %vm85, %v75, 0
  %v264 = vsel %vm85, %v76, 0
  %v267 = vsel %vm85, %v77, 0
  %v270 = vsel %vm85, %v78, 0
  %v273 = vsel %vm85, %v79, 0
  %v276 = vsel %vm85, %v80, 0
  %278 = vmatprep.subr.mxu0 0.0
  %279 = vmatpush1.msra.mxu0 %v81
  %280 = vmatprep.subr.mxu0 0.0
  %281 = vmatpush1.msra.mxu0 %v82
  %282 = vmatprep.subr.mxu0 0.0
  %283 = vmatpush1.msra.mxu0 %v83
  %284 = vmatprep.subr.mxu0 0.0
  %285 = vmatpush1.msra.mxu0 %v84
  %286 = vmatprep.subr.mxu0 0.0
  %287 = vmatpush1.msra.mxu0 0.0
  %288 = vmatprep.subr.mxu0 0.0
  %289 = vmatpush1.msra.mxu0 0.0
  %290 = vmatprep.subr.mxu0 0.0
  %291 = vmatpush1.msra.mxu0 0.0
  %292 = vmatprep.subr.mxu0 0.0
  %293 = vmatpush1.msra.mxu0 0.0
  %294 = vmatprep.subr.mxu0 0.0
  %295 = vmatpush1.msra.mxu0 0.0
  %296 = vmatprep.subr.mxu0 0.0
  %297 = vmatpush1.msra.mxu0 0.0
  %298 = vmatprep.subr.mxu0 0.0
  %299 = vmatpush1.msra.mxu0 0.0
  %300 = vmatprep.subr.mxu0 0.0
  %301 = vmatpush1.msra.mxu0 0.0
  %302 = vmatprep.subr.mxu0 0.0
  %303 = vmatpush1.msra.mxu0 0.0
  %304 = vmatprep.subr.mxu0 0.0
  %305 = vmatpush1.msra.mxu0 0.0
  %306 = vmatprep.subr.mxu0 0.0
  %307 = vmatpush1.msra.mxu0 0.0
  %308 = vmatprep.subr.mxu0 0.0
  %309 = vmatpush1.msra.mxu0 0.0
  %310 = vmatprep.subr.mxu0 0.0
  %311 = vmatpush1.msra.mxu0 0.0
  %312 = vmatprep.subr.mxu0 0.0
  %313 = vmatpush1.msra.mxu0 0.0
  %314 = vmatprep.subr.mxu0 0.0
  %315 = vmatpush1.msra.mxu0 0.0
  %316 = vmatprep.subr.mxu0 0.0
  %317 = vmatpush1.msra.mxu0 0.0
  %318 = vmatprep.subr.mxu0 0.0
  %319 = vmatpush1.msra.mxu0 0.0
  %320 = vmatprep.subr.mxu0 0.0
  %321 = vmatpush1.msra.mxu0 0.0
  %322 = vmatprep.subr.mxu0 0.0
  %323 = vmatpush1.msra.mxu0 0.0
  %324 = vmatprep.subr.mxu0 0.0
  %325 = vmatpush1.msra.mxu0 0.0
  %326 = vmatprep.subr.mxu0 0.0
  %327 = vmatpush1.msra.mxu0 0.0
  %328 = vmatprep.subr.mxu0 0.0
  %329 = vmatpush1.msra.mxu0 0.0
  %330 = vmatprep.subr.mxu0 0.0
  %331 = vmatpush1.msra.mxu0 0.0
  %332 = vmatprep.subr.mxu0 0.0
  %333 = vmatpush1.msra.mxu0 0.0
  %334 = vmatprep.subr.mxu0 0.0
  %335 = vmatpush1.msra.mxu0 0.0
  %336 = vmatprep.subr.mxu0 0.0
  %337 = vmatpush1.msra.mxu0 0.0
  %338 = vmatprep.subr.mxu0 0.0
  %339 = vmatpush1.msra.mxu0 0.0
  %340 = vmatprep.subr.mxu0 0.0
  %341 = vmatpush1.msra.mxu0 0.0
  %342 = vmatprep.mubr.f32.mxu0 0.0
  %343 = vmatmul.mubr.f32.gmra.mrb[0].mxu0 %v87
  %v344 = vpop.f32.mrb[0].mxu0
  %v345 = vadd.f32 0.0, %v344
  %v346 = vpop.f32.mrb[0].mxu0
  %347 = vmatprep.mubr.f32.mxu0 0.0
  %348 = vmatmul.mubr.f32.gmra.mrb[0].mxu0 %v90
  %v349 = vpop.f32.mrb[0].mxu0
  %v350 = vadd.f32 0.0, %v349
  %v351 = vpop.f32.mrb[0].mxu0
  %352 = vmatprep.mubr.f32.mxu0 0.0
  %353 = vmatmul.mubr.f32.gmra.mrb[0].mxu0 %v93
  %v354 = vpop.f32.mrb[0].mxu0
  %v355 = vadd.f32 0.0, %v354
  %v356 = vpop.f32.mrb[0].mxu0
  %357 = vmatprep.mubr.f32.mxu0 0.0
  %358 = vmatmul.mubr.f32.gmra.mrb[0].mxu0 %v96
  %v359 = vpop.f32.mrb[0].mxu0
  %v360 = vadd.f32 0.0, %v359
  %v361 = vpop.f32.mrb[0].mxu0
  %362 = vmatprep.mubr.f32.mxu0 0.0
  %363 = vmatmul.mubr.f32.gmra.mrb[0].mxu0 %v99
  %v364 = vpop.f32.mrb[0].mxu0
  %v365 = vadd.f32 0.0, %v364
  %v366 = vpop.f32.mrb[0].mxu0
  %367 = vmatprep.mubr.f32.mxu0 0.0
  %368 = vmatmul.mubr.f32.gmra.mrb[0].mxu0 %v102
  %v369 = vpop.f32.mrb[0].mxu0
  %v370 = vadd.f32 0.0, %v369
  %v371 = vpop.f32.mrb[0].mxu0
  %372 = vmatprep.mubr.f32.mxu0 0.0
  %373 = vmatmul.mubr.f32.gmra.mrb[0].mxu0 %v105
  %v374 = vpop.f32.mrb[0].mxu0
  %v375 = vadd.f32 0.0, %v374
  %v376 = vpop.f32.mrb[0].mxu0
  %377 = vmatprep.mubr.f32.mxu0 0.0
  %378 = vmatmul.mubr.f32.gmra.mrb[0].mxu0 %v108
  %v379 = vpop.f32.mrb[0].mxu0
  %v380 = vadd.f32 0.0, %v379
  %v381 = vpop.f32.mrb[0].mxu0
  %382 = vmatprep.mubr.f32.mxu0 0.0
  %383 = vmatmul.mubr.f32.gmra.mrb[0].mxu0 %v111
  %v384 = vpop.f32.mrb[0].mxu0
  %v385 = vadd.f32 0.0, %v384
  %v386 = vpop.f32.mrb[0].mxu0
  %387 = vmatprep.mubr.f32.mxu0 0.0
  %388 = vmatmul.mubr.f32.gmra.mrb[0].mxu0 %v114
  %v389 = vpop.f32.mrb[0].mxu0
  %v390 = vadd.f32 0.0, %v389
  %v391 = vpop.f32.mrb[0].mxu0
  %392 = vmatprep.mubr.f32.mxu0 0.0
  %393 = vmatmul.mubr.f32.gmra.mrb[0].mxu0 %v117
  %v394 = vpop.f32.mrb[0].mxu0
  %v395 = vadd.f32 0.0, %v394
  %v396 = vpop.f32.mrb[0].mxu0
  %397 = vmatprep.mubr.f32.mxu0 0.0
  %398 = vmatmul.mubr.f32.gmra.mrb[0].mxu0 %v120
  %v399 = vpop.f32.mrb[0].mxu0
  %v400 = vadd.f32 0.0, %v399
  %v401 = vpop.f32.mrb[0].mxu0
  %402 = vmatprep.mubr.f32.mxu0 0.0
  %403 = vmatmul.mubr.f32.gmra.mrb[0].mxu0 %v123
  %v404 = vpop.f32.mrb[0].mxu0
  %v405 = vadd.f32 0.0, %v404
  %v406 = vpop.f32.mrb[0].mxu0
  %407 = vmatprep.mubr.f32.mxu0 0.0
  %408 = vmatmul.mubr.f32.gmra.mrb[0].mxu0 %v126
  %v409 = vpop.f32.mrb[0].mxu0
  %v410 = vadd.f32 0.0, %v409
  %v411 = vpop.f32.mrb[0].mxu0
  %412 = vmatprep.mubr.f32.mxu0 0.0
  %413 = vmatmul.mubr.f32.gmra.mrb[0].mxu0 %v129
  %v414 = vpop.f32.mrb[0].mxu0
  %v415 = vadd.f32 0.0, %v414
  %v416 = vpop.f32.mrb[0].mxu0
  %417 = vmatprep.mubr.f32.mxu0 0.0
  %418 = vmatmul.mubr.f32.gmra.mrb[0].mxu0 %v132
  %v419 = vpop.f32.mrb[0].mxu0
  %v420 = vadd.f32 0.0, %v419
  %v421 = vpop.f32.mrb[0].mxu0
  %422 = vmatprep.mubr.f32.mxu0 0.0
  %423 = vmatmul.mubr.f32.gmra.mrb[0].mxu0 %v135
  %v424 = vpop.f32.mrb[0].mxu0
  %v425 = vadd.f32 0.0, %v424
  %v426 = vpop.f32.mrb[0].mxu0
  %427 = vmatprep.mubr.f32.mxu0 0.0
  %428 = vmatmul.mubr.f32.gmra.mrb[0].mxu0 %v138
  %v429 = vpop.f32.mrb[0].mxu0
  %v430 = vadd.f32 0.0, %v429
  %v431 = vpop.f32.mrb[0].mxu0
  %432 = vmatprep.mubr.f32.mxu0 0.0
  %433 = vmatmul.mubr.f32.gmra.mrb[0].mxu0 %v141
  %v434 = vpop.f32.mrb[0].mxu0
  %v435 = vadd.f32 0.0, %v434
  %v436 = vpop.f32.mrb[0].mxu0
  %437 = vmatprep.mubr.f32.mxu0 0.0
  %438 = vmatmul.mubr.f32.gmra.mrb[0].mxu0 %v144
  %v439 = vpop.f32.mrb[0].mxu0
  %v440 = vadd.f32 0.0, %v439
  %v441 = vpop.f32.mrb[0].mxu0
  %442 = vmatprep.mubr.f32.mxu0 0.0
  %443 = vmatmul.mubr.f32.gmra.mrb[0].mxu0 %v147
  %v444 = vpop.f32.mrb[0].mxu0
  %v445 = vadd.f32 0.0, %v444
  %v446 = vpop.f32.mrb[0].mxu0
  %447 = vmatprep.mubr.f32.mxu0 0.0
  %448 = vmatmul.mubr.f32.gmra.mrb[0].mxu0 %v150
  %v449 = vpop.f32.mrb[0].mxu0
  %v450 = vadd.f32 0.0, %v449
  %v451 = vpop.f32.mrb[0].mxu0
  %452 = vmatprep.mubr.f32.mxu0 0.0
  %453 = vmatmul.mubr.f32.gmra.mrb[0].mxu0 %v153
  %v454 = vpop.f32.mrb[0].mxu0
  %v455 = vadd.f32 0.0, %v454
  %v456 = vpop.f32.mrb[0].mxu0
  %457 = vmatprep.mubr.f32.mxu0 0.0
  %458 = vmatmul.mubr.f32.gmra.mrb[0].mxu0 %v156
  %v459 = vpop.f32.mrb[0].mxu0
  %v460 = vadd.f32 0.0, %v459
  %v461 = vpop.f32.mrb[0].mxu0
  %462 = vmatprep.mubr.f32.mxu0 0.0
  %463 = vmatmul.mubr.f32.gmra.mrb[0].mxu0 %v159
  %v464 = vpop.f32.mrb[0].mxu0
  %v465 = vadd.f32 0.0, %v464
  %v466 = vpop.f32.mrb[0].mxu0
  %467 = vmatprep.mubr.f32.mxu0 0.0
  %468 = vmatmul.mubr.f32.gmra.mrb[0].mxu0 %v162
  %v469 = vpop.f32.mrb[0].mxu0
  %v470 = vadd.f32 0.0, %v469
  %v471 = vpop.f32.mrb[0].mxu0
  %472 = vmatprep.mubr.f32.mxu0 0.0
  %473 = vmatmul.mubr.f32.gmra.mrb[0].mxu0 %v165
  %v474 = vpop.f32.mrb[0].mxu0
  %v475 = vadd.f32 0.0, %v474
  %v476 = vpop.f32.mrb[0].mxu0
  %477 = vmatprep.mubr.f32.mxu0 0.0
  %478 = vmatmul.mubr.f32.gmra.mrb[0].mxu0 %v168
  %v479 = vpop.f32.mrb[0].mxu0
  %v480 = vadd.f32 0.0, %v479
  %v481 = vpop.f32.mrb[0].mxu0
  %482 = vmatprep.mubr.f32.mxu0 0.0
  %483 = vmatmul.mubr.f32.gmra.mrb[0].mxu0 %v171
  %v484 = vpop.f32.mrb[0].mxu0
  %v485 = vadd.f32 0.0, %v484
  %v486 = vpop.f32.mrb[0].mxu0
  %487 = vmatprep.mubr.f32.mxu0 0.0
  %488 = vmatmul.mubr.f32.gmra.mrb[0].mxu0 %v174
  %v489 = vpop.f32.mrb[0].mxu0
  %v490 = vadd.f32 0.0, %v489
  %v491 = vpop.f32.mrb[0].mxu0
  %492 = vmatprep.mubr.f32.mxu0 0.0
  %493 = vmatmul.mubr.f32.gmra.mrb[0].mxu0 %v177
  %v494 = vpop.f32.mrb[0].mxu0
  %v495 = vadd.f32 0.0, %v494
  %v496 = vpop.f32.mrb[0].mxu0
  %497 = vmatprep.mubr.f32.mxu0 0.0
  %498 = vmatmul.mubr.f32.gmra.mrb[0].mxu0 %v180
  %v499 = vpop.f32.mrb[0].mxu0
  %v500 = vadd.f32 0.0, %v499
  %v501 = vpop.f32.mrb[0].mxu0
  %502 = vmatprep.mubr.f32.mxu0 0.0
  %503 = vmatmul.mubr.f32.gmra.mrb[0].mxu0 %v183
  %v504 = vpop.f32.mrb[0].mxu0
  %v505 = vadd.f32 0.0, %v504
  %v506 = vpop.f32.mrb[0].mxu0
  %507 = vmatprep.mubr.f32.mxu0 0.0
  %508 = vmatmul.mubr.f32.gmra.mrb[0].mxu0 %v186
  %v509 = vpop.f32.mrb[0].mxu0
  %v510 = vadd.f32 0.0, %v509
  %v511 = vpop.f32.mrb[0].mxu0
  %512 = vmatprep.mubr.f32.mxu0 0.0
  %513 = vmatmul.mubr.f32.gmra.mrb[0].mxu0 %v189
  %v514 = vpop.f32.mrb[0].mxu0
  %v515 = vadd.f32 0.0, %v514
  %v516 = vpop.f32.mrb[0].mxu0
  %517 = vmatprep.mubr.f32.mxu0 0.0
  %518 = vmatmul.mubr.f32.gmra.mrb[0].mxu0 %v192
  %v519 = vpop.f32.mrb[0].mxu0
  %v520 = vadd.f32 0.0, %v519
  %v521 = vpop.f32.mrb[0].mxu0
  %522 = vmatprep.mubr.f32.mxu0 0.0
  %523 = vmatmul.mubr.f32.gmra.mrb[0].mxu0 %v195
  %v524 = vpop.f32.mrb[0].mxu0
  %v525 = vadd.f32 0.0, %v524
  %v526 = vpop.f32.mrb[0].mxu0
  %527 = vmatprep.mubr.f32.mxu0 0.0
  %528 = vmatmul.mubr.f32.gmra.mrb[0].mxu0 %v198
  %v529 = vpop.f32.mrb[0].mxu0
  %v530 = vadd.f32 0.0, %v529
  %v531 = vpop.f32.mrb[0].mxu0
  %532 = vmatprep.mubr.f32.mxu0 0.0
  %533 = vmatmul.mubr.f32.gmra.mrb[0].mxu0 %v201
  %v534 = vpop.f32.mrb[0].mxu0
  %v535 = vadd.f32 0.0, %v534
  %v536 = vpop.f32.mrb[0].mxu0
  %537 = vmatprep.mubr.f32.mxu0 0.0
  %538 = vmatmul.mubr.f32.gmra.mrb[0].mxu0 %v204
  %v539 = vpop.f32.mrb[0].mxu0
  %v540 = vadd.f32 0.0, %v539
  %v541 = vpop.f32.mrb[0].mxu0
  %542 = vmatprep.mubr.f32.mxu0 0.0
  %543 = vmatmul.mubr.f32.gmra.mrb[0].mxu0 %v207
  %v544 = vpop.f32.mrb[0].mxu0
  %v545 = vadd.f32 0.0, %v544
  %v546 = vpop.f32.mrb[0].mxu0
  %547 = vmatprep.mubr.f32.mxu0 0.0
  %548 = vmatmul.mubr.f32.gmra.mrb[0].mxu0 %v210
  %v549 = vpop.f32.mrb[0].mxu0
  %v550 = vadd.f32 0.0, %v549
  %v551 = vpop.f32.mrb[0].mxu0
  %552 = vmatprep.mubr.f32.mxu0 0.0
  %553 = vmatmul.mubr.f32.gmra.mrb[0].mxu0 %v213
  %v554 = vpop.f32.mrb[0].mxu0
  %v555 = vadd.f32 0.0, %v554
  %v556 = vpop.f32.mrb[0].mxu0
  %557 = vmatprep.mubr.f32.mxu0 0.0
  %558 = vmatmul.mubr.f32.gmra.mrb[0].mxu0 %v216
  %v559 = vpop.f32.mrb[0].mxu0
  %v560 = vadd.f32 0.0, %v559
  %v561 = vpop.f32.mrb[0].mxu0
  %562 = vmatprep.mubr.f32.mxu0 0.0
  %563 = vmatmul.mubr.f32.gmra.mrb[0].mxu0 %v219
  %v564 = vpop.f32.mrb[0].mxu0
  %v565 = vadd.f32 0.0, %v564
  %v566 = vpop.f32.mrb[0].mxu0
  %567 = vmatprep.mubr.f32.mxu0 0.0
  %568 = vmatmul.mubr.f32.gmra.mrb[0].mxu0 %v222
  %v569 = vpop.f32.mrb[0].mxu0
  %v570 = vadd.f32 0.0, %v569
  %v571 = vpop.f32.mrb[0].mxu0
  %572 = vmatprep.mubr.f32.mxu0 0.0
  %573 = vmatmul.mubr.f32.gmra.mrb[0].mxu0 %v225
  %v574 = vpop.f32.mrb[0].mxu0
  %v575 = vadd.f32 0.0, %v574
  %v576 = vpop.f32.mrb[0].mxu0
  %577 = vmatprep.mubr.f32.mxu0 0.0
  %578 = vmatmul.mubr.f32.gmra.mrb[0].mxu0 %v228
  %v579 = vpop.f32.mrb[0].mxu0
  %v580 = vadd.f32 0.0, %v579
  %v581 = vpop.f32.mrb[0].mxu0
  %582 = vmatprep.mubr.f32.mxu0 0.0
  %583 = vmatmul.mubr.f32.gmra.mrb[0].mxu0 %v231
  %v584 = vpop.f32.mrb[0].mxu0
  %v585 = vadd.f32 0.0, %v584
  %v586 = vpop.f32.mrb[0].mxu0
  %587 = vmatprep.mubr.f32.mxu0 0.0
  %588 = vmatmul.mubr.f32.gmra.mrb[0].mxu0 %v234
  %v589 = vpop.f32.mrb[0].mxu0
  %v590 = vadd.f32 0.0, %v589
  %v591 = vpop.f32.mrb[0].mxu0
  %592 = vmatprep.mubr.f32.mxu0 0.0
  %593 = vmatmul.mubr.f32.gmra.mrb[0].mxu0 %v237
  %v594 = vpop.f32.mrb[0].mxu0
  %v595 = vadd.f32 0.0, %v594
  %v596 = vpop.f32.mrb[0].mxu0
  %597 = vmatprep.mubr.f32.mxu0 0.0
  %598 = vmatmul.mubr.f32.gmra.mrb[0].mxu0 %v240
  %v599 = vpop.f32.mrb[0].mxu0
  %v600 = vadd.f32 0.0, %v599
  %v601 = vpop.f32.mrb[0].mxu0
  %602 = vmatprep.mubr.f32.mxu0 0.0
  %603 = vmatmul.mubr.f32.gmra.mrb[0].mxu0 %v243
  %v604 = vpop.f32.mrb[0].mxu0
  %v605 = vadd.f32 0.0, %v604
  %v606 = vpop.f32.mrb[0].mxu0
  %607 = vmatprep.mubr.f32.mxu0 0.0
  %608 = vmatmul.mubr.f32.gmra.mrb[0].mxu0 %v246
  %v609 = vpop.f32.mrb[0].mxu0
  %v610 = vadd.f32 0.0, %v609
  %v611 = vpop.f32.mrb[0].mxu0
  %612 = vmatprep.mubr.f32.mxu0 0.0
  %613 = vmatmul.mubr.f32.gmra.mrb[0].mxu0 %v249
  %v614 = vpop.f32.mrb[0].mxu0
  %v615 = vadd.f32 0.0, %v614
  %v616 = vpop.f32.mrb[0].mxu0
  %617 = vmatprep.mubr.f32.mxu0 0.0
  %618 = vmatmul.mubr.f32.gmra.mrb[0].mxu0 %v252
  %v619 = vpop.f32.mrb[0].mxu0
  %v620 = vadd.f32 0.0, %v619
  %v621 = vpop.f32.mrb[0].mxu0
  %622 = vmatprep.mubr.f32.mxu0 0.0
  %623 = vmatmul.mubr.f32.gmra.mrb[0].mxu0 %v255
  %v624 = vpop.f32.mrb[0].mxu0
  %v625 = vadd.f32 0.0, %v624
  %v626 = vpop.f32.mrb[0].mxu0
  %627 = vmatprep.mubr.f32.mxu0 0.0
  %628 = vmatmul.mubr.f32.gmra.mrb[0].mxu0 %v258
  %v629 = vpop.f32.mrb[0].mxu0
  %v630 = vadd.f32 0.0, %v629
  %v631 = vpop.f32.mrb[0].mxu0
  %632 = vmatprep.mubr.f32.mxu0 0.0
  %633 = vmatmul.mubr.f32.gmra.mrb[0].mxu0 %v261
  %v634 = vpop.f32.mrb[0].mxu0
  %v635 = vadd.f32 0.0, %v634
  %v636 = vpop.f32.mrb[0].mxu0
  %637 = vmatprep.mubr.f32.mxu0 0.0
  %638 = vmatmul.mubr.f32.gmra.mrb[0].mxu0 %v264
  %v639 = vpop.f32.mrb[0].mxu0
  %v640 = vadd.f32 0.0, %v639
  %v641 = vpop.f32.mrb[0].mxu0
  %642 = vmatprep.mubr.f32.mxu0 0.0
  %643 = vmatmul.mubr.f32.gmra.mrb[0].mxu0 %v267
  %v644 = vpop.f32.mrb[0].mxu0
  %v645 = vadd.f32 0.0, %v644
  %v646 = vpop.f32.mrb[0].mxu0
  %647 = vmatprep.mubr.f32.mxu0 0.0
  %648 = vmatmul.mubr.f32.gmra.mrb[0].mxu0 %v270
  %v649 = vpop.f32.mrb[0].mxu0
  %v650 = vadd.f32 0.0, %v649
  %v651 = vpop.f32.mrb[0].mxu0
  %652 = vmatprep.mubr.f32.mxu0 0.0
  %653 = vmatmul.mubr.f32.gmra.mrb[0].mxu0 %v273
  %v654 = vpop.f32.mrb[0].mxu0
  %v655 = vadd.f32 0.0, %v654
  %v656 = vpop.f32.mrb[0].mxu0
  %657 = vmatprep.mubr.f32.mxu0 0.0
  %658 = vmatmul.mubr.f32.gmra.mrb[0].mxu0 %v276
  %v659 = vpop.f32.mrb[0].mxu0
  %v660 = vadd.f32 0.0, %v659
  %v661 = vpop.f32.mrb[0].mxu0
  %662 = vdwg.mxu0
  %v663 = vld [vmem:[%s2] sm:$0x1]
  %v665 = vlaneseq
  %v666 = vshrl.u32 %v665, 7
  %v667 = vsub.s32 0, %v666
  %v668 = vrot.slane %v663, %v667
  %v670 = vmul.f32 %v345, %v668
  %v671 = vmul.f32 %v350, %v668
  %v672 = vmul.f32 %v355, %v668
  %v673 = vmul.f32 %v360, %v668
  %v674 = vmul.f32 %v365, %v668
  %v675 = vmul.f32 %v370, %v668
  %v676 = vmul.f32 %v375, %v668
  %v677 = vmul.f32 %v380, %v668
  %v678 = vmul.f32 %v385, %v668
  %v679 = vmul.f32 %v390, %v668
  %v680 = vmul.f32 %v395, %v668
  %v681 = vmul.f32 %v400, %v668
  %v682 = vmul.f32 %v405, %v668
  %v683 = vmul.f32 %v410, %v668
  %v684 = vmul.f32 %v415, %v668
  %v685 = vmul.f32 %v420, %v668
  %v686 = vmul.f32 %v425, %v668
  %v687 = vmul.f32 %v430, %v668
  %v688 = vmul.f32 %v435, %v668
  %v689 = vmul.f32 %v440, %v668
  %v690 = vmul.f32 %v445, %v668
  %v691 = vmul.f32 %v450, %v668
  %v692 = vmul.f32 %v455, %v668
  %v693 = vmul.f32 %v460, %v668
  %v694 = vmul.f32 %v465, %v668
  %v695 = vmul.f32 %v470, %v668
  %v696 = vmul.f32 %v475, %v668
  %v697 = vmul.f32 %v480, %v668
  %v698 = vmul.f32 %v485, %v668
  %v699 = vmul.f32 %v490, %v668
  %v700 = vmul.f32 %v495, %v668
  %v701 = vmul.f32 %v500, %v668
  %v702 = vmul.f32 %v505, %v668
  %v703 = vmul.f32 %v510, %v668
  %v704 = vmul.f32 %v515, %v668
  %v705 = vmul.f32 %v520, %v668
  %v706 = vmul.f32 %v525, %v668
  %v707 = vmul.f32 %v530, %v668
  %v708 = vmul.f32 %v535, %v668
  %v709 = vmul.f32 %v540, %v668
  %v710 = vmul.f32 %v545, %v668
  %v711 = vmul.f32 %v550, %v668
  %v712 = vmul.f32 %v555, %v668
  %v713 = vmul.f32 %v560, %v668
  %v714 = vmul.f32 %v565, %v668
  %v715 = vmul.f32 %v570, %v668
  %v716 = vmul.f32 %v575, %v668
  %v717 = vmul.f32 %v580, %v668
  %v718 = vmul.f32 %v585, %v668
  %v719 = vmul.f32 %v590, %v668
  %v720 = vmul.f32 %v595, %v668
  %v721 = vmul.f32 %v600, %v668
  %v722 = vmul.f32 %v605, %v668
  %v723 = vmul.f32 %v610, %v668
  %v724 = vmul.f32 %v615, %v668
  %v725 = vmul.f32 %v620, %v668
  %v726 = vmul.f32 %v625, %v668
  %v727 = vmul.f32 %v630, %v668
  %v728 = vmul.f32 %v635, %v668
  %v729 = vmul.f32 %v640, %v668
  %v730 = vmul.f32 %v645, %v668
  %v731 = vmul.f32 %v650, %v668
  %v732 = vmul.f32 %v655, %v668
  %v733 = vmul.f32 %v660, %v668
  %v734 = vld [vmem:[%s3] sm:$0x1]
  %v736 = vlaneseq
  %v737 = vshrl.u32 %v736, 7
  %v738 = vsub.s32 0, %v737
  %v739 = vrot.slane %v734, %v738
  %v741 = vadd.f32 %v670, %v739
  %v742 = vadd.f32 %v671, %v739
  %v743 = vadd.f32 %v672, %v739
  %v744 = vadd.f32 %v673, %v739
  %v745 = vadd.f32 %v674, %v739
  %v746 = vadd.f32 %v675, %v739
  %v747 = vadd.f32 %v676, %v739
  %v748 = vadd.f32 %v677, %v739
  %v749 = vadd.f32 %v678, %v739
  %v750 = vadd.f32 %v679, %v739
  %v751 = vadd.f32 %v680, %v739
  %v752 = vadd.f32 %v681, %v739
  %v753 = vadd.f32 %v682, %v739
  %v754 = vadd.f32 %v683, %v739
  %v755 = vadd.f32 %v684, %v739
  %v756 = vadd.f32 %v685, %v739
  %v757 = vadd.f32 %v686, %v739
  %v758 = vadd.f32 %v687, %v739
  %v759 = vadd.f32 %v688, %v739
  %v760 = vadd.f32 %v689, %v739
  %v761 = vadd.f32 %v690, %v739
  %v762 = vadd.f32 %v691, %v739
  %v763 = vadd.f32 %v692, %v739
  %v764 = vadd.f32 %v693, %v739
  %v765 = vadd.f32 %v694, %v739
  %v766 = vadd.f32 %v695, %v739
  %v767 = vadd.f32 %v696, %v739
  %v768 = vadd.f32 %v697, %v739
  %v769 = vadd.f32 %v698, %v739
  %v770 = vadd.f32 %v699, %v739
  %v771 = vadd.f32 %v700, %v739
  %v772 = vadd.f32 %v701, %v739
  %v773 = vadd.f32 %v702, %v739
  %v774 = vadd.f32 %v703, %v739
  %v775 = vadd.f32 %v704, %v739
  %v776 = vadd.f32 %v705, %v739
  %v777 = vadd.f32 %v706, %v739
  %v778 = vadd.f32 %v707, %v739
  %v779 = vadd.f32 %v708, %v739
  %v780 = vadd.f32 %v709, %v739
  %v781 = vadd.f32 %v710, %v739
  %v782 = vadd.f32 %v711, %v739
  %v783 = vadd.f32 %v712, %v739
  %v784 = vadd.f32 %v713, %v739
  %v785 = vadd.f32 %v714, %v739
  %v786 = vadd.f32 %v715, %v739
  %v787 = vadd.f32 %v716, %v739
  %v788 = vadd.f32 %v717, %v739
  %v789 = vadd.f32 %v718, %v739
  %v790 = vadd.f32 %v719, %v739
  %v791 = vadd.f32 %v720, %v739
  %v792 = vadd.f32 %v721, %v739
  %v793 = vadd.f32 %v722, %v739
  %v794 = vadd.f32 %v723, %v739
  %v795 = vadd.f32 %v724, %v739
  %v796 = vadd.f32 %v725, %v739
  %v797 = vadd.f32 %v726, %v739
  %v798 = vadd.f32 %v727, %v739
  %v799 = vadd.f32 %v728, %v739
  %v800 = vadd.f32 %v729, %v739
  %v801 = vadd.f32 %v730, %v739
  %v802 = vadd.f32 %v731, %v739
  %v803 = vadd.f32 %v732, %v739
  %v804 = vadd.f32 %v733, %v739
  %v805 = vmul.f32 %v741, 0.5
  %v806 = vmul.f32 %v742, 0.5
  %v807 = vmul.f32 %v743, 0.5
  %v808 = vmul.f32 %v744, 0.5
  %v809 = vmul.f32 %v745, 0.5
  %v810 = vmul.f32 %v746, 0.5
  %v811 = vmul.f32 %v747, 0.5
  %v812 = vmul.f32 %v748, 0.5
  %v813 = vmul.f32 %v749, 0.5
  %v814 = vmul.f32 %v750, 0.5
  %v815 = vmul.f32 %v751, 0.5
  %v816 = vmul.f32 %v752, 0.5
  %v817 = vmul.f32 %v753, 0.5
  %v818 = vmul.f32 %v754, 0.5
  %v819 = vmul.f32 %v755, 0.5
  %v820 = vmul.f32 %v756, 0.5
  %v821 = vmul.f32 %v757, 0.5
  %v822 = vmul.f32 %v758, 0.5
  %v823 = vmul.f32 %v759, 0.5
  %v824 = vmul.f32 %v760, 0.5
  %v825 = vmul.f32 %v761, 0.5
  %v826 = vmul.f32 %v762, 0.5
  %v827 = vmul.f32 %v763, 0.5
  %v828 = vmul.f32 %v764, 0.5
  %v829 = vmul.f32 %v765, 0.5
  %v830 = vmul.f32 %v766, 0.5
  %v831 = vmul.f32 %v767, 0.5
  %v832 = vmul.f32 %v768, 0.5
  %v833 = vmul.f32 %v769, 0.5
  %v834 = vmul.f32 %v770, 0.5
  %v835 = vmul.f32 %v771, 0.5
  %v836 = vmul.f32 %v772, 0.5
  %v837 = vmul.f32 %v773, 0.5
  %v838 = vmul.f32 %v774, 0.5
  %v839 = vmul.f32 %v775, 0.5
  %v840 = vmul.f32 %v776, 0.5
  %v841 = vmul.f32 %v777, 0.5
  %v842 = vmul.f32 %v778, 0.5
  %v843 = vmul.f32 %v779, 0.5
  %v844 = vmul.f32 %v780, 0.5
  %v845 = vmul.f32 %v781, 0.5
  %v846 = vmul.f32 %v782, 0.5
  %v847 = vmul.f32 %v783, 0.5
  %v848 = vmul.f32 %v784, 0.5
  %v849 = vmul.f32 %v785, 0.5
  %v850 = vmul.f32 %v786, 0.5
  %v851 = vmul.f32 %v787, 0.5
  %v852 = vmul.f32 %v788, 0.5
  %v853 = vmul.f32 %v789, 0.5
  %v854 = vmul.f32 %v790, 0.5
  %v855 = vmul.f32 %v791, 0.5
  %v856 = vmul.f32 %v792, 0.5
  %v857 = vmul.f32 %v793, 0.5
  %v858 = vmul.f32 %v794, 0.5
  %v859 = vmul.f32 %v795, 0.5
  %v860 = vmul.f32 %v796, 0.5
  %v861 = vmul.f32 %v797, 0.5
  %v862 = vmul.f32 %v798, 0.5
  %v863 = vmul.f32 %v799, 0.5
  %v864 = vmul.f32 %v800, 0.5
  %v865 = vmul.f32 %v801, 0.5
  %v866 = vmul.f32 %v802, 0.5
  %v867 = vmul.f32 %v803, 0.5
  %v868 = vmul.f32 %v804, 0.5
  %v869 = vmul.f32 %v741, 0.70710677
  %v870 = vmul.f32 %v742, 0.70710677
  %v871 = vmul.f32 %v743, 0.70710677
  %v872 = vmul.f32 %v744, 0.70710677
  %v873 = vmul.f32 %v745, 0.70710677
  %v874 = vmul.f32 %v746, 0.70710677
  %v875 = vmul.f32 %v747, 0.70710677
  %v876 = vmul.f32 %v748, 0.70710677
  %v877 = vmul.f32 %v749, 0.70710677
  %v878 = vmul.f32 %v750, 0.70710677
  %v879 = vmul.f32 %v751, 0.70710677
  %v880 = vmul.f32 %v752, 0.70710677
  %v881 = vmul.f32 %v753, 0.70710677
  %v882 = vmul.f32 %v754, 0.70710677
  %v883 = vmul.f32 %v755, 0.70710677
  %v884 = vmul.f32 %v756, 0.70710677
  %v885 = vmul.f32 %v757, 0.70710677
  %v886 = vmul.f32 %v758, 0.70710677
  %v887 = vmul.f32 %v759, 0.70710677
  %v888 = vmul.f32 %v760, 0.70710677
  %v889 = vmul.f32 %v761, 0.70710677
  %v890 = vmul.f32 %v762, 0.70710677
  %v891 = vmul.f32 %v763, 0.70710677
  %v892 = vmul.f32 %v764, 0.70710677
  %v893 = vmul.f32 %v765, 0.70710677
  %v894 = vmul.f32 %v766, 0.70710677
  %v895 = vmul.f32 %v767, 0.70710677
  %v896 = vmul.f32 %v768, 0.70710677
  %v897 = vmul.f32 %v769, 0.70710677
  %v898 = vmul.f32 %v770, 0.70710677
  %v899 = vmul.f32 %v771, 0.70710677
  %v900 = vmul.f32 %v772, 0.70710677
  %v901 = vmul.f32 %v773, 0.70710677
  %v902 = vmul.f32 %v774, 0.70710677
  %v903 = vmul.f32 %v775, 0.70710677
  %v904 = vmul.f32 %v776, 0.70710677
  %v905 = vmul.f32 %v777, 0.70710677
  %v906 = vmul.f32 %v778, 0.70710677
  %v907 = vmul.f32 %v779, 0.70710677
  %v908 = vmul.f32 %v780, 0.70710677
  %v909 = vmul.f32 %v781, 0.70710677
  %v910 = vmul.f32 %v782, 0.70710677
  %v911 = vmul.f32 %v783, 0.70710677
  %v912 = vmul.f32 %v784, 0.70710677
  %v913 = vmul.f32 %v785, 0.70710677
  %v914 = vmul.f32 %v786, 0.70710677
  %v915 = vmul.f32 %v787, 0.70710677
  %v916 = vmul.f32 %v788, 0.70710677
  %v917 = vmul.f32 %v789, 0.70710677
  %v918 = vmul.f32 %v790, 0.70710677
  %v919 = vmul.f32 %v791, 0.70710677
  %v920 = vmul.f32 %v792, 0.70710677
  %v921 = vmul.f32 %v793, 0.70710677
  %v922 = vmul.f32 %v794, 0.70710677
  %v923 = vmul.f32 %v795, 0.70710677
  %v924 = vmul.f32 %v796, 0.70710677
  %v925 = vmul.f32 %v797, 0.70710677
  %v926 = vmul.f32 %v798, 0.70710677
  %v927 = vmul.f32 %v799, 0.70710677
  %v928 = vmul.f32 %v800, 0.70710677
  %v929 = vmul.f32 %v801, 0.70710677
  %v930 = vmul.f32 %v802, 0.70710677
  %v931 = vmul.f32 %v803, 0.70710677
  %v932 = vmul.f32 %v804, 0.70710677
  %v933 = verf.f32.pop %v869
  %v934 = verf.f32.pop %v870
  %v935 = verf.f32.pop %v871
  %v936 = verf.f32.pop %v872
  %v937 = verf.f32.pop %v873
  %v938 = verf.f32.pop %v874
  %v939 = verf.f32.pop %v875
  %v940 = verf.f32.pop %v876
  %v941 = verf.f32.pop %v877
  %v942 = verf.f32.pop %v878
  %v943 = verf.f32.pop %v879
  %v944 = verf.f32.pop %v880
  %v945 = verf.f32.pop %v881
  %v946 = verf.f32.pop %v882
  %v947 = verf.f32.pop %v883
  %v948 = verf.f32.pop %v884
  %v949 = verf.f32.pop %v885
  %v950 = verf.f32.pop %v886
  %v951 = verf.f32.pop %v887
  %v952 = verf.f32.pop %v888
  %v953 = verf.f32.pop %v889
  %v954 = verf.f32.pop %v890
  %v955 = verf.f32.pop %v891
  %v956 = verf.f32.pop %v892
  %v957 = verf.f32.pop %v893
  %v958 = verf.f32.pop %v894
  %v959 = verf.f32.pop %v895
  %v960 = verf.f32.pop %v896
  %v961 = verf.f32.pop %v897
  %v962 = verf.f32.pop %v898
  %v963 = verf.f32.pop %v899
  %v964 = verf.f32.pop %v900
  %v965 = verf.f32.pop %v901
  %v966 = verf.f32.pop %v902
  %v967 = verf.f32.pop %v903
  %v968 = verf.f32.pop %v904
  %v969 = verf.f32.pop %v905
  %v970 = verf.f32.pop %v906
  %v971 = verf.f32.pop %v907
  %v972 = verf.f32.pop %v908
  %v973 = verf.f32.pop %v909
  %v974 = verf.f32.pop %v910
  %v975 = verf.f32.pop %v911
  %v976 = verf.f32.pop %v912
  %v977 = verf.f32.pop %v913
  %v978 = verf.f32.pop %v914
  %v979 = verf.f32.pop %v915
  %v980 = verf.f32.pop %v916
  %v981 = verf.f32.pop %v917
  %v982 = verf.f32.pop %v918
  %v983 = verf.f32.pop %v919
  %v984 = verf.f32.pop %v920
  %v985 = verf.f32.pop %v921
  %v986 = verf.f32.pop %v922
  %v987 = verf.f32.pop %v923
  %v988 = verf.f32.pop %v924
  %v989 = verf.f32.pop %v925
  %v990 = verf.f32.pop %v926
  %v991 = verf.f32.pop %v927
  %v992 = verf.f32.pop %v928
  %v993 = verf.f32.pop %v929
  %v994 = verf.f32.pop %v930
  %v995 = verf.f32.pop %v931
  %v996 = verf.f32.pop %v932
  %v997 = vadd.f32 %v933, 1.0
  %v998 = vadd.f32 %v934, 1.0
  %v999 = vadd.f32 %v935, 1.0
  %v1000 = vadd.f32 %v936, 1.0
  %v1001 = vadd.f32 %v937, 1.0
  %v1002 = vadd.f32 %v938, 1.0
  %v1003 = vadd.f32 %v939, 1.0
  %v1004 = vadd.f32 %v940, 1.0
  %v1005 = vadd.f32 %v941, 1.0
  %v1006 = vadd.f32 %v942, 1.0
  %v1007 = vadd.f32 %v943, 1.0
  %v1008 = vadd.f32 %v944, 1.0
  %v1009 = vadd.f32 %v945, 1.0
  %v1010 = vadd.f32 %v946, 1.0
  %v1011 = vadd.f32 %v947, 1.0
  %v1012 = vadd.f32 %v948, 1.0
  %v1013 = vadd.f32 %v949, 1.0
  %v1014 = vadd.f32 %v950, 1.0
  %v1015 = vadd.f32 %v951, 1.0
  %v1016 = vadd.f32 %v952, 1.0
  %v1017 = vadd.f32 %v953, 1.0
  %v1018 = vadd.f32 %v954, 1.0
  %v1019 = vadd.f32 %v955, 1.0
  %v1020 = vadd.f32 %v956, 1.0
  %v1021 = vadd.f32 %v957, 1.0
  %v1022 = vadd.f32 %v958, 1.0
  %v1023 = vadd.f32 %v959, 1.0
  %v1024 = vadd.f32 %v960, 1.0
  %v1025 = vadd.f32 %v961, 1.0
  %v1026 = vadd.f32 %v962, 1.0
  %v1027 = vadd.f32 %v963, 1.0
  %v1028 = vadd.f32 %v964, 1.0
  %v1029 = vadd.f32 %v965, 1.0
  %v1030 = vadd.f32 %v966, 1.0
  %v1031 = vadd.f32 %v967, 1.0
  %v1032 = vadd.f32 %v968, 1.0
  %v1033 = vadd.f32 %v969, 1.0
  %v1034 = vadd.f32 %v970, 1.0
  %v1035 = vadd.f32 %v971, 1.0
  %v1036 = vadd.f32 %v972, 1.0
  %v1037 = vadd.f32 %v973, 1.0
  %v1038 = vadd.f32 %v974, 1.0
  %v1039 = vadd.f32 %v975, 1.0
  %v1040 = vadd.f32 %v976, 1.0
  %v1041 = vadd.f32 %v977, 1.0
  %v1042 = vadd.f32 %v978, 1.0
  %v1043 = vadd.f32 %v979, 1.0
  %v1044 = vadd.f32 %v980, 1.0
  %v1045 = vadd.f32 %v981, 1.0
  %v1046 = vadd.f32 %v982, 1.0
  %v1047 = vadd.f32 %v983, 1.0
  %v1048 = vadd.f32 %v984, 1.0
  %v1049 = vadd.f32 %v985, 1.0
  %v1050 = vadd.f32 %v986, 1.0
  %v1051 = vadd.f32 %v987, 1.0
  %v1052 = vadd.f32 %v988, 1.0
  %v1053 = vadd.f32 %v989, 1.0
  %v1054 = vadd.f32 %v990, 1.0
  %v1055 = vadd.f32 %v991, 1.0
  %v1056 = vadd.f32 %v992, 1.0
  %v1057 = vadd.f32 %v993, 1.0
  %v1058 = vadd.f32 %v994, 1.0
  %v1059 = vadd.f32 %v995, 1.0
  %v1060 = vadd.f32 %v996, 1.0
  %v1061 = vmul.f32 %v805, %v997
  %v1062 = vmul.f32 %v806, %v998
  %v1063 = vmul.f32 %v807, %v999
  %v1064 = vmul.f32 %v808, %v1000
  %v1065 = vmul.f32 %v809, %v1001
  %v1066 = vmul.f32 %v810, %v1002
  %v1067 = vmul.f32 %v811, %v1003
  %v1068 = vmul.f32 %v812, %v1004
  %v1069 = vmul.f32 %v813, %v1005
  %v1070 = vmul.f32 %v814, %v1006
  %v1071 = vmul.f32 %v815, %v1007
  %v1072 = vmul.f32 %v816, %v1008
  %v1073 = vmul.f32 %v817, %v1009
  %v1074 = vmul.f32 %v818, %v1010
  %v1075 = vmul.f32 %v819, %v1011
  %v1076 = vmul.f32 %v820, %v1012
  %v1077 = vmul.f32 %v821, %v1013
  %v1078 = vmul.f32 %v822, %v1014
  %v1079 = vmul.f32 %v823, %v1015
  %v1080 = vmul.f32 %v824, %v1016
  %v1081 = vmul.f32 %v825, %v1017
  %v1082 = vmul.f32 %v826, %v1018
  %v1083 = vmul.f32 %v827, %v1019
  %v1084 = vmul.f32 %v828, %v1020
  %v1085 = vmul.f32 %v829, %v1021
  %v1086 = vmul.f32 %v830, %v1022
  %v1087 = vmul.f32 %v831, %v1023
  %v1088 = vmul.f32 %v832, %v1024
  %v1089 = vmul.f32 %v833, %v1025
  %v1090 = vmul.f32 %v834, %v1026
  %v1091 = vmul.f32 %v835, %v1027
  %v1092 = vmul.f32 %v836, %v1028
  %v1093 = vmul.f32 %v837, %v1029
  %v1094 = vmul.f32 %v838, %v1030
  %v1095 = vmul.f32 %v839, %v1031
  %v1096 = vmul.f32 %v840, %v1032
  %v1097 = vmul.f32 %v841, %v1033
  %v1098 = vmul.f32 %v842, %v1034
  %v1099 = vmul.f32 %v843, %v1035
  %v1100 = vmul.f32 %v844, %v1036
  %v1101 = vmul.f32 %v845, %v1037
  %v1102 = vmul.f32 %v846, %v1038
  %v1103 = vmul.f32 %v847, %v1039
  %v1104 = vmul.f32 %v848, %v1040
  %v1105 = vmul.f32 %v849, %v1041
  %v1106 = vmul.f32 %v850, %v1042
  %v1107 = vmul.f32 %v851, %v1043
  %v1108 = vmul.f32 %v852, %v1044
  %v1109 = vmul.f32 %v853, %v1045
  %v1110 = vmul.f32 %v854, %v1046
  %v1111 = vmul.f32 %v855, %v1047
  %v1112 = vmul.f32 %v856, %v1048
  %v1113 = vmul.f32 %v857, %v1049
  %v1114 = vmul.f32 %v858, %v1050
  %v1115 = vmul.f32 %v859, %v1051
  %v1116 = vmul.f32 %v860, %v1052
  %v1117 = vmul.f32 %v861, %v1053
  %v1118 = vmul.f32 %v862, %v1054
  %v1119 = vmul.f32 %v863, %v1055
  %v1120 = vmul.f32 %v864, %v1056
  %v1121 = vmul.f32 %v865, %v1057
  %v1122 = vmul.f32 %v866, %v1058
  %v1123 = vmul.f32 %v867, %v1059
  %v1124 = vmul.f32 %v868, %v1060
  %1125 = vst [vmem:[%s4] sm:$0xff] %v1061
  %1126 = vst [vmem:[%s4 + $0x8] sm:$0xff] %v1062
  %1127 = vst [vmem:[%s4 + $0x10] sm:$0xff] %v1063
  %1128 = vst [vmem:[%s4 + $0x18] sm:$0xff] %v1064
  %1129 = vst [vmem:[%s4 + $0x20] sm:$0xff] %v1065
  %1130 = vst [vmem:[%s4 + $0x28] sm:$0xff] %v1066
  %1131 = vst [vmem:[%s4 + $0x30] sm:$0xff] %v1067
  %1132 = vst [vmem:[%s4 + $0x38] sm:$0xff] %v1068
  %1133 = vst [vmem:[%s4 + $0x40] sm:$0xff] %v1069
  %1134 = vst [vmem:[%s4 + $0x48] sm:$0xff] %v1070
  %1135 = vst [vmem:[%s4 + $0x50] sm:$0xff] %v1071
  %1136 = vst [vmem:[%s4 + $0x58] sm:$0xff] %v1072
  %1137 = vst [vmem:[%s4 + $0x60] sm:$0xff] %v1073
  %1138 = vst [vmem:[%s4 + $0x68] sm:$0xff] %v1074
  %1139 = vst [vmem:[%s4 + $0x70] sm:$0xff] %v1075
  %1140 = vst [vmem:[%s4 + $0x78] sm:$0xff] %v1076
  %1141 = vst [vmem:[%s4 + $0x80] sm:$0xff] %v1077
  %1142 = vst [vmem:[%s4 + $0x88] sm:$0xff] %v1078
  %1143 = vst [vmem:[%s4 + $0x90] sm:$0xff] %v1079
  %1144 = vst [vmem:[%s4 + $0x98] sm:$0xff] %v1080
  %1145 = vst [vmem:[%s4 + $0xa0] sm:$0xff] %v1081
  %1146 = vst [vmem:[%s4 + $0xa8] sm:$0xff] %v1082
  %1147 = vst [vmem:[%s4 + $0xb0] sm:$0xff] %v1083
  %1148 = vst [vmem:[%s4 + $0xb8] sm:$0xff] %v1084
  %1149 = vst [vmem:[%s4 + $0xc0] sm:$0xff] %v1085
  %1150 = vst [vmem:[%s4 + $0xc8] sm:$0xff] %v1086
  %1151 = vst [vmem:[%s4 + $0xd0] sm:$0xff] %v1087
  %1152 = vst [vmem:[%s4 + $0xd8] sm:$0xff] %v1088
  %1153 = vst [vmem:[%s4 + $0xe0] sm:$0xff] %v1089
  %1154 = vst [vmem:[%s4 + $0xe8] sm:$0xff] %v1090
  %1155 = vst [vmem:[%s4 + $0xf0] sm:$0xff] %v1091
  %1156 = vst [vmem:[%s4 + $0xf8] sm:$0xff] %v1092
  %1157 = vst [vmem:[%s4 + $0x100] sm:$0xff] %v1093
  %1158 = vst [vmem:[%s4 + $0x108] sm:$0xff] %v1094
  %1159 = vst [vmem:[%s4 + $0x110] sm:$0xff] %v1095
  %1160 = vst [vmem:[%s4 + $0x118] sm:$0xff] %v1096
  %1161 = vst [vmem:[%s4 + $0x120] sm:$0xff] %v1097
  %1162 = vst [vmem:[%s4 + $0x128] sm:$0xff] %v1098
  %1163 = vst [vmem:[%s4 + $0x130] sm:$0xff] %v1099
  %1164 = vst [vmem:[%s4 + $0x138] sm:$0xff] %v1100
  %1165 = vst [vmem:[%s4 + $0x140] sm:$0xff] %v1101
  %1166 = vst [vmem:[%s4 + $0x148] sm:$0xff] %v1102
  %1167 = vst [vmem:[%s4 + $0x150] sm:$0xff] %v1103
  %1168 = vst [vmem:[%s4 + $0x158] sm:$0xff] %v1104
  %1169 = vst [vmem:[%s4 + $0x160] sm:$0xff] %v1105
  %1170 = vst [vmem:[%s4 + $0x168] sm:$0xff] %v1106
  %1171 = vst [vmem:[%s4 + $0x170] sm:$0xff] %v1107
  %1172 = vst [vmem:[%s4 + $0x178] sm:$0xff] %v1108
  %1173 = vst [vmem:[%s4 + $0x180] sm:$0xff] %v1109
  %1174 = vst [vmem:[%s4 + $0x188] sm:$0xff] %v1110
  %1175 = vst [vmem:[%s4 + $0x190] sm:$0xff] %v1111
  %1176 = vst [vmem:[%s4 + $0x198] sm:$0xff] %v1112
  %1177 = vst [vmem:[%s4 + $0x1a0] sm:$0xff] %v1113
  %1178 = vst [vmem:[%s4 + $0x1a8] sm:$0xff] %v1114
  %1179 = vst [vmem:[%s4 + $0x1b0] sm:$0xff] %v1115
  %1180 = vst [vmem:[%s4 + $0x1b8] sm:$0xff] %v1116
  %1181 = vst [vmem:[%s4 + $0x1c0] sm:$0xff] %v1117
  %1182 = vst [vmem:[%s4 + $0x1c8] sm:$0xff] %v1118
  %1183 = vst [vmem:[%s4 + $0x1d0] sm:$0xff] %v1119
  %1184 = vst [vmem:[%s4 + $0x1d8] sm:$0xff] %v1120
  %1185 = vst [vmem:[%s4 + $0x1e0] sm:$0xff] %v1121
  %1186 = vst [vmem:[%s4 + $0x1e8] sm:$0xff] %v1122
  %1187 = vst [vmem:[%s4 + $0x1f0] sm:$0xff] %v1123
  %1188 = vst [vmem:[%s4 + $0x1f8] sm:$0xff] %v1124
  // Predicated region
  $region18: #{upsample_stack_forward.7} parent=0 // pred_check
    _
  $region19: #{upsample_stack_forward.7} parent=0 // pred_check_branch
    %1190 = sbr.rel (0) target = $region21
  $region20: #{upsample_stack_forward.7} parent=0 // pred_region
    _
  $region21: #{upsample_stack_forward.7} parent=0 // pred_fallthru
    _
  // Predicated region
  $region22: #{upsample_stack_forward.7} parent=0 // pred_check
    _
  $region23: #{upsample_stack_forward.7} parent=0 // pred_check_branch
    %1192 = sbr.rel (0) target = $region25
  $region24: #{upsample_stack_forward.7} parent=0 // pred_region
    _
  $region25: #{upsample_stack_forward.7} parent=0 // pred_fallthru
    _

</llo_original>
